<compile_context>
chip_gen: v7x
topology: tpu7x:2x2x1
jax: 0.10.0
libtpu: 0.0.40
codegen_flags: <defaults>
</compile_context>

<pallas_src>
import jax
import jax.numpy as jnp
from jax.experimental import pallas as pl
from jax.experimental.pallas import tpu as pltpu

# --------------------------- model hyper-parameters ---------------------------
NUM_TOKENS = 64
DIM        = 32
HEADS      = 2
DIM_HEAD   = 16
FF_MULT    = 4
FF_DIM     = FF_MULT * DIM
SEQ_LEN    = 16          # total sequence length
CROSS_LEN  = 8           # cross_attn_seq_len (prefix length)
LAT_LEN    = SEQ_LEN - CROSS_LEN
MAX_SEQ    = 32
BATCH      = 2
EPS        = 1e-5
NEG_INF    = -1e30
NT_PAD     = 128         # logits head padded to a lane-dense (multiple-of-128) width
INV_SQRT2  = 0.7071067811865476

# power-of-two shifts for in-kernel index math (avoid vector int div/mod)
assert (LAT_LEN & (LAT_LEN - 1)) == 0 and (SEQ_LEN & (SEQ_LEN - 1)) == 0
LAT_SHIFT = LAT_LEN.bit_length() - 1
SEQ_SHIFT = SEQ_LEN.bit_length() - 1

# ----------------------- packed parameter-slab layout -------------------------
# One lane-dense f32 slab [SLAB_ROWS, 128]; every parameter at a static row range.
SLAB_COLS = 128
R_TEMB = 0                      # token embedding            [64, 32]
R_POS  = R_TEMB + NUM_TOKENS    # pos emb tiled per batch    [B*S, 32]
R_WQ   = R_POS + BATCH*SEQ_LEN  # folded Wq (LN_q, *scale)   [32, 32]
R_WKV  = R_WQ + DIM             # folded fused Wkv (LN_kv)   [32, 64]
R_WO   = R_WKV + DIM            # Wo                         [32, 32]
R_W1   = R_WO + HEADS*DIM_HEAD  # folded W1 (LN_ff)          [32, 128]
R_W2   = R_W1 + DIM             # W2                         [128, 32]
R_WL   = R_W2 + FF_DIM          # folded padded logits head  [32, 128]
R_BIAS = R_WL + DIM             # 5 bias rows: bq, bkv, b1, b2, bl
SLAB_ROWS = ((R_BIAS + 8 + 7) // 8) * 8   # 392


# ------------------------------- fused kernel ---------------------------------

def _fused_forward_kernel(tok_ref, kmask_ref, slab_ref, out_ref):
    f32 = jnp.float32
    BS = BATCH * SEQ_LEN
    BL = BATCH * LAT_LEN
    HD = HEADS * DIM_HEAD

    # ---- static slices of the single parameter slab (one DMA paid already) ----
    temb = slab_ref[R_TEMB:R_TEMB + NUM_TOKENS, 0:DIM]
    pos  = slab_ref[R_POS:R_POS + BS, 0:DIM]
    wq   = slab_ref[R_WQ:R_WQ + DIM, 0:HD]
    wkv  = slab_ref[R_WKV:R_WKV + DIM, 0:2 * HD]
    wo   = slab_ref[R_WO:R_WO + HD, 0:DIM]
    w1   = slab_ref[R_W1:R_W1 + DIM, 0:FF_DIM]
    w2   = slab_ref[R_W2:R_W2 + FF_DIM, 0:DIM]
    wl   = slab_ref[R_WL:R_WL + DIM, 0:NT_PAD]
    bq   = slab_ref[R_BIAS + 0:R_BIAS + 1, 0:HD]
    bkv  = slab_ref[R_BIAS + 1:R_BIAS + 2, 0:2 * HD]
    b1   = slab_ref[R_BIAS + 2:R_BIAS + 3, 0:FF_DIM]
    b2   = slab_ref[R_BIAS + 3:R_BIAS + 4, 0:DIM]
    bl   = slab_ref[R_BIAS + 4:R_BIAS + 5, 0:NT_PAD]

    # ---- token embedding via one-hot @ table (MXU) + pre-tiled positional emb ----
    onehot = (jax.lax.broadcasted_iota(jnp.int32, (BS, NUM_TOKENS), 1)
              == tok_ref[...]).astype(f32)                                 # [B*S, V]
    h = jnp.dot(onehot, temb, preferred_element_type=f32) + pos            # [B*S, D]
    # latent residual stream = last LAT_LEN rows of each batch (static, 8-aligned slices)
    lat0 = jnp.concatenate(
        [h[b * SEQ_LEN + CROSS_LEN:(b + 1) * SEQ_LEN, :] for b in range(BATCH)],
        axis=0)                                                            # [B*L, D]

    def ln_norm(x):  # mean/rsqrt only; gamma/beta folded into downstream weights
        mu = jnp.mean(x, axis=-1, keepdims=True)
        var = jnp.mean(jnp.square(x - mu), axis=-1, keepdims=True)
        return (x - mu) * jax.lax.rsqrt(var + EPS)

    # ---- cross/causal attention block (pre-norm, residual) ----
    q  = jnp.dot(ln_norm(lat0), wq, preferred_element_type=f32) + bq      # [B*L, H*Dh] (scale folded)
    kv = jnp.dot(ln_norm(h), wkv, preferred_element_type=f32) + bkv       # [B*S, 2*H*Dh]
    k_all = kv[:, 0:HD]
    v_all = kv[:, HD:2 * HD]

    # single additive bias [B*L, B*S]: same-batch & causal & prefix-key-mask
    r_iota = jax.lax.broadcasted_iota(jnp.int32, (BL, BS), 0)
    c_iota = jax.lax.broadcasted_iota(jnp.int32, (BL, BS), 1)
    batch_q = jnp.right_shift(r_iota, LAT_SHIFT)
    qpos    = (r_iota & (LAT_LEN - 1)) + CROSS_LEN
    batch_k = jnp.right_shift(c_iota, SEQ_SHIFT)
    kpos    = c_iota & (SEQ_LEN - 1)
    key_ok  = kmask_ref[...] > 0.5                                        # [1, B*S]
    allowed = jnp.logical_and(jnp.logical_and(batch_q == batch_k, kpos <= qpos), key_ok)
    bias = jnp.where(allowed, 0.0, NEG_INF).astype(f32)                   # [B*L, B*S]

    head_outs = []
    for hh in range(HEADS):
        qh = q[:, hh * DIM_HEAD:(hh + 1) * DIM_HEAD]                      # [B*L, Dh]
        kh = k_all[:, hh * DIM_HEAD:(hh + 1) * DIM_HEAD]                  # [B*S, Dh]
        vh = v_all[:, hh * DIM_HEAD:(hh + 1) * DIM_HEAD]                  # [B*S, Dh]
        s = jax.lax.dot_general(qh, kh, (((1,), (1,)), ((), ())),
                                preferred_element_type=f32) + bias        # [B*L, B*S]
        m = jnp.max(s, axis=-1, keepdims=True)
        p = jnp.exp(s - m)
        p = p / jnp.sum(p, axis=-1, keepdims=True)                        # exact softmax
        head_outs.append(jnp.dot(p, vh, preferred_element_type=f32))      # [B*L, Dh]
    attn = jnp.dot(jnp.concatenate(head_outs, axis=1), wo,
                   preferred_element_type=f32)                            # one Wo matmul
    # TODO(synk): q/k/v/o projection biases assumed zero (true for this model's init);
    # fold real checkpoint biases into bq/bkv and an attn-output bias row if present.

    lat1 = lat0 + attn

    # ---- feed-forward block (exact erf GELU, like torch.nn.GELU) ----
    hmid = jnp.dot(ln_norm(lat1), w1, preferred_element_type=f32) + b1
    hmid = 0.5 * hmid * (1.0 + jax.lax.erf(hmid * INV_SQRT2))
    lat2 = lat1 + jnp.dot(hmid, w2, preferred_element_type=f32) + b2

    # ---- final LN + lane-dense (padded) logits head: one unmasked full-lane store ----
    out_ref[...] = jnp.dot(ln_norm(lat2), wl, preferred_element_type=f32) + bl


# ------------------------- deterministic parameter init -----------------------

def init_params(key):
    ks = jax.random.split(key, 9)

    def nrm(k, shape, scale=0.02):
        return (scale * jax.random.normal(k, shape)).astype(jnp.float32)

    ones = lambda n: jnp.ones((n,), jnp.float32)
    zeros = lambda n: jnp.zeros((n,), jnp.float32)
    return {
        "token_emb": nrm(ks[0], (NUM_TOKENS, DIM)),
        "pos_emb":   nrm(ks[1], (MAX_SEQ, DIM)),
        "ln_q_g": ones(DIM),  "ln_q_b": zeros(DIM),
        "ln_kv_g": ones(DIM), "ln_kv_b": zeros(DIM),
        "wq": nrm(ks[2], (DIM, HEADS * DIM_HEAD)),
        "wk": nrm(ks[3], (DIM, HEADS * DIM_HEAD)),
        "wv": nrm(ks[4], (DIM, HEADS * DIM_HEAD)),
        "wo": nrm(ks[5], (HEADS * DIM_HEAD, DIM)),
        "ln_ff_g": ones(DIM), "ln_ff_b": zeros(DIM),
        "w1": nrm(ks[6], (DIM, FF_DIM)), "b1": zeros(FF_DIM),
        "w2": nrm(ks[7], (FF_DIM, DIM)), "b2": zeros(DIM),
        "ln_f_g": ones(DIM), "ln_f_b": zeros(DIM),
        "w_logits": nrm(ks[8], (DIM, NUM_TOKENS)), "b_logits": zeros(NUM_TOKENS),
    }


def pack_params(p):
    """Fold LN affines / softmax scale into weights and pack everything into ONE
    lane-dense f32 slab [SLAB_ROWS, 128] (done once at adapter init)."""
    f32 = jnp.float32
    scale = DIM_HEAD ** -0.5

    wkv   = jnp.concatenate([p["wk"], p["wv"]], axis=1)                   # fused K/V
    wq_f  = (p["ln_q_g"][:, None] * p["wq"]) * scale
    bq_f  = (p["ln_q_b"] @ p["wq"]) * scale
    wkv_f = p["ln_kv_g"][:, None] * wkv
    bkv_f = p["ln_kv_b"] @ wkv
    w1_f  = p["ln_ff_g"][:, None] * p["w1"]
    b1_f  = p["ln_ff_b"] @ p["w1"] + p["b1"]
    wl_pad = jnp.zeros((DIM, NT_PAD), f32).at[:, :NUM_TOKENS].set(p["w_logits"])
    bl_pad = jnp.zeros((NT_PAD,), f32).at[:NUM_TOKENS].set(p["b_logits"])
    wl_f  = p["ln_f_g"][:, None] * wl_pad
    bl_f  = p["ln_f_b"] @ wl_pad + bl_pad
    pos_tiled = jnp.tile(p["pos_emb"][:SEQ_LEN, :], (BATCH, 1))           # [B*S, D]

    slab = jnp.zeros((SLAB_ROWS, SLAB_COLS), f32)
    slab = slab.at[R_TEMB:R_TEMB + NUM_TOKENS, :DIM].set(p["token_emb"])
    slab = slab.at[R_POS:R_POS + BATCH * SEQ_LEN, :DIM].set(pos_tiled)
    slab = slab.at[R_WQ:R_WQ + DIM, :HEADS * DIM_HEAD].set(wq_f)
    slab = slab.at[R_WKV:R_WKV + DIM, :2 * HEADS * DIM_HEAD].set(wkv_f)
    slab = slab.at[R_WO:R_WO + HEADS * DIM_HEAD, :DIM].set(p["wo"])
    slab = slab.at[R_W1:R_W1 + DIM, :FF_DIM].set(w1_f)
    slab = slab.at[R_W2:R_W2 + FF_DIM, :DIM].set(p["w2"])
    slab = slab.at[R_WL:R_WL + DIM, :NT_PAD].set(wl_f)
    slab = slab.at[R_BIAS + 0, :HEADS * DIM_HEAD].set(bq_f)
    slab = slab.at[R_BIAS + 1, :2 * HEADS * DIM_HEAD].set(bkv_f)
    slab = slab.at[R_BIAS + 2, :FF_DIM].set(b1_f)
    slab = slab.at[R_BIAS + 3, :DIM].set(p["b2"])
    slab = slab.at[R_BIAS + 4, :NT_PAD].set(bl_f)
    return slab


# --------------------------------- forward ------------------------------------

def _perceiver_ar_forward(slab, x_tokens, prefix_mask):
    B, S = x_tokens.shape
    assert B == BATCH and S == SEQ_LEN

    # key mask over the full flattened sequence: prefix keys use prefix_mask,
    # latent keys are always visible (causality handled in-kernel).
    key_mask = jnp.concatenate(
        [prefix_mask.astype(jnp.float32), jnp.ones((B, LAT_LEN), jnp.float32)],
        axis=1).reshape(1, B * S)                                  # [1, B*S]
    tok = x_tokens.reshape(B * S, 1).astype(jnp.int32)             # [B*S, 1]

    # Gridless: the whole forward is one invocation; everything (weights slab,
    # activations, ~250 KB total) is VMEM/vreg resident for the full kernel.
    # TODO(synk): if BATCH/SEQ_LEN are scaled up, switch to a batch grid with
    # dimension_semantics=("parallel",) before approaching the VMEM limit.
    logits_pad = pl.pallas_call(
        _fused_forward_kernel,
        out_shape=jax.ShapeDtypeStruct((B * LAT_LEN, NT_PAD), jnp.float32),
    )(tok, key_mask, slab)

    # slice the lane-padded vocab back to NUM_TOKENS.
    return logits_pad[:, :NUM_TOKENS].reshape(B, LAT_LEN, NUM_TOKENS)


perceiver_ar_forward = jax.jit(_perceiver_ar_forward)


class PerceiverARAdapter:
    """JAX/Pallas equivalent of the PyTorch PerceiverARadapter wrapper."""

    def __init__(self, params):
        self.slab = pack_params(params)
        self.cross_attn_seq_len = CROSS_LEN

    def process_labels(self, labels):
        return labels[:, self.cross_attn_seq_len:]

    def __call__(self, x, mask=None):
        if mask is None:
            mask = jnp.ones((x.shape[0], self.cross_attn_seq_len), bool)
        # labels=None -> the model returns logits over the latent positions only.
        return perceiver_ar_forward(self.slab, x, mask)


# ----------------------------------- main --------------------------------------

if __name__ == "__main__":
    key = jax.random.PRNGKey(0)
    pkey, xkey, mkey = jax.random.split(key, 3)

    params = init_params(pkey)
    x = jax.random.randint(xkey, (BATCH, SEQ_LEN), 0, NUM_TOKENS, dtype=jnp.int32)
    mask = jax.random.bernoulli(mkey, 0.9, (BATCH, CROSS_LEN))

    adapter = PerceiverARAdapter(params)
    out = adapter(x, mask)
    jax.block_until_ready(out)

    assert out.shape == (BATCH, LAT_LEN, NUM_TOKENS)
    assert out.dtype == jnp.float32
    assert bool(jnp.all(jnp.isfinite(out)))
    print("KERNEL_OK")
</pallas_src>

<mosaic_0001>
module attributes {stable_mosaic.version = 11 : i64} {
  func.func @_fused_forward_kernel(%arg0: memref<32x1xi32, #tpu.memory_space<vmem>>, %arg1: memref<1x32xf32, #tpu.memory_space<vmem>>, %arg2: memref<392x128xf32, #tpu.memory_space<vmem>>, %arg3: memref<16x128xf32, #tpu.memory_space<vmem>>) attributes {dimension_semantics = [], scalar_prefetch = 0 : i64, scratch_operands = 0 : i64, tpu.core_type = #tpu.core_type<tc>} {
    %c0 = arith.constant 0 : index
    %c0_0 = arith.constant 0 : index
    %0 = vector.load %arg2[%c0, %c0_0] : memref<392x128xf32, #tpu.memory_space<vmem>>, vector<64x32xf32>
    %c64 = arith.constant 64 : index
    %c0_1 = arith.constant 0 : index
    %1 = vector.load %arg2[%c64, %c0_1] : memref<392x128xf32, #tpu.memory_space<vmem>>, vector<32x32xf32>
    %c96 = arith.constant 96 : index
    %c0_2 = arith.constant 0 : index
    %2 = vector.load %arg2[%c96, %c0_2] : memref<392x128xf32, #tpu.memory_space<vmem>>, vector<32x32xf32>
    %c128 = arith.constant 128 : index
    %c0_3 = arith.constant 0 : index
    %3 = vector.load %arg2[%c128, %c0_3] : memref<392x128xf32, #tpu.memory_space<vmem>>, vector<32x64xf32>
    %c160 = arith.constant 160 : index
    %c0_4 = arith.constant 0 : index
    %4 = vector.load %arg2[%c160, %c0_4] : memref<392x128xf32, #tpu.memory_space<vmem>>, vector<32x32xf32>
    %c192 = arith.constant 192 : index
    %c0_5 = arith.constant 0 : index
    %5 = vector.load %arg2[%c192, %c0_5] : memref<392x128xf32, #tpu.memory_space<vmem>>, vector<32x128xf32>
    %c224 = arith.constant 224 : index
    %c0_6 = arith.constant 0 : index
    %6 = vector.load %arg2[%c224, %c0_6] : memref<392x128xf32, #tpu.memory_space<vmem>>, vector<128x32xf32>
    %c352 = arith.constant 352 : index
    %c0_7 = arith.constant 0 : index
    %7 = vector.load %arg2[%c352, %c0_7] : memref<392x128xf32, #tpu.memory_space<vmem>>, vector<32x128xf32>
    %c384 = arith.constant 384 : index
    %c0_8 = arith.constant 0 : index
    %8 = vector.load %arg2[%c384, %c0_8] : memref<392x128xf32, #tpu.memory_space<vmem>>, vector<1x32xf32>
    %c385 = arith.constant 385 : index
    %c0_9 = arith.constant 0 : index
    %9 = vector.load %arg2[%c385, %c0_9] : memref<392x128xf32, #tpu.memory_space<vmem>>, vector<1x64xf32>
    %c386 = arith.constant 386 : index
    %c0_10 = arith.constant 0 : index
    %10 = vector.load %arg2[%c386, %c0_10] : memref<392x128xf32, #tpu.memory_space<vmem>>, vector<1x128xf32>
    %c387 = arith.constant 387 : index
    %c0_11 = arith.constant 0 : index
    %11 = vector.load %arg2[%c387, %c0_11] : memref<392x128xf32, #tpu.memory_space<vmem>>, vector<1x32xf32>
    %c388 = arith.constant 388 : index
    %c0_12 = arith.constant 0 : index
    %12 = vector.load %arg2[%c388, %c0_12] : memref<392x128xf32, #tpu.memory_space<vmem>>, vector<1x128xf32>
    %13 = tpu.iota {dimensions = array<i32: 1>} : vector<32x64xi32>
    %c0_13 = arith.constant 0 : index
    %c0_14 = arith.constant 0 : index
    %14 = vector.load %arg0[%c0_13, %c0_14] : memref<32x1xi32, #tpu.memory_space<vmem>>, vector<32x1xi32>
    %15 = vector.broadcast %14 : vector<32x1xi32> to vector<32x64xi32>
    %16 = arith.cmpi eq, %13, %15 : vector<32x64xi32>
    %17 = arith.extui %16 : vector<32x64xi1> to vector<32x64xi32>
    %18 = arith.sitofp %17 : vector<32x64xi32> to vector<32x64xf32>
    %cst = arith.constant dense<0.000000e+00> : vector<32x32xf32>
    %19 = tpu.matmul %18, %0, %cst {dimension_numbers = #tpu.dot_dimension_numbers<[1], [0], [0], [1], [0, 0, 1, 1], [], []>} : vector<32x64xf32>, vector<64x32xf32>, vector<32x32xf32> -> vector<32x32xf32>
    %20 = arith.addf %19, %1 : vector<32x32xf32>
    %21 = vector.extract_strided_slice %20 {offsets = [8, 0], sizes = [8, 32], strides = [1, 1]} : vector<32x32xf32> to vector<8x32xf32>
    %22 = vector.extract_strided_slice %20 {offsets = [24, 0], sizes = [8, 32], strides = [1, 1]} : vector<32x32xf32> to vector<8x32xf32>
    %23 = tpu.concatenate %21, %22 in 0 : vector<8x32xf32>, vector<8x32xf32> -> vector<16x32xf32>
    %cst_15 = arith.constant dense<0.000000e+00> : vector<16xf32>
    %24 = vector.multi_reduction <add>, %23, %cst_15 [1] : vector<16x32xf32> to vector<16xf32>
    %25 = vector.shape_cast %24 : vector<16xf32> to vector<16x1xf32>
    %cst_16 = arith.constant 3.200000e+01 : f32
    %26 = vector.broadcast %cst_16 : f32 to vector<16x1xf32>
    %27 = arith.divf %25, %26 : vector<16x1xf32>
    %28 = vector.broadcast %27 : vector<16x1xf32> to vector<16x32xf32>
    %29 = arith.subf %23, %28 : vector<16x32xf32>
    %30 = arith.mulf %29, %29 : vector<16x32xf32>
    %cst_17 = arith.constant dense<0.000000e+00> : vector<16xf32>
    %31 = vector.multi_reduction <add>, %30, %cst_17 [1] : vector<16x32xf32> to vector<16xf32>
    %32 = vector.shape_cast %31 : vector<16xf32> to vector<16x1xf32>
    %cst_18 = arith.constant 3.200000e+01 : f32
    %33 = vector.broadcast %cst_18 : f32 to vector<16x1xf32>
    %34 = arith.divf %32, %33 : vector<16x1xf32>
    %35 = vector.broadcast %27 : vector<16x1xf32> to vector<16x32xf32>
    %36 = arith.subf %23, %35 : vector<16x32xf32>
    %cst_19 = arith.constant 9.99999974E-6 : f32
    %37 = vector.broadcast %cst_19 : f32 to vector<16x1xf32>
    %38 = arith.addf %34, %37 : vector<16x1xf32>
    %39 = math.rsqrt %38 : vector<16x1xf32>
    %40 = vector.broadcast %39 : vector<16x1xf32> to vector<16x32xf32>
    %41 = arith.mulf %36, %40 : vector<16x32xf32>
    %cst_20 = arith.constant dense<0.000000e+00> : vector<16x32xf32>
    %42 = tpu.matmul %41, %2, %cst_20 {dimension_numbers = #tpu.dot_dimension_numbers<[1], [0], [0], [1], [0, 0, 1, 1], [], []>} : vector<16x32xf32>, vector<32x32xf32>, vector<16x32xf32> -> vector<16x32xf32>
    %43 = vector.broadcast %8 : vector<1x32xf32> to vector<16x32xf32>
    %44 = arith.addf %42, %43 : vector<16x32xf32>
    %cst_21 = arith.constant dense<0.000000e+00> : vector<32xf32>
    %45 = vector.multi_reduction <add>, %20, %cst_21 [1] : vector<32x32xf32> to vector<32xf32>
    %46 = vector.shape_cast %45 : vector<32xf32> to vector<32x1xf32>
    %cst_22 = arith.constant 3.200000e+01 : f32
    %47 = vector.broadcast %cst_22 : f32 to vector<32x1xf32>
    %48 = arith.divf %46, %47 : vector<32x1xf32>
    %49 = vector.broadcast %48 : vector<32x1xf32> to vector<32x32xf32>
    %50 = arith.subf %20, %49 : vector<32x32xf32>
    %51 = arith.mulf %50, %50 : vector<32x32xf32>
    %cst_23 = arith.constant dense<0.000000e+00> : vector<32xf32>
    %52 = vector.multi_reduction <add>, %51, %cst_23 [1] : vector<32x32xf32> to vector<32xf32>
    %53 = vector.shape_cast %52 : vector<32xf32> to vector<32x1xf32>
    %cst_24 = arith.constant 3.200000e+01 : f32
    %54 = vector.broadcast %cst_24 : f32 to vector<32x1xf32>
    %55 = arith.divf %53, %54 : vector<32x1xf32>
    %56 = vector.broadcast %48 : vector<32x1xf32> to vector<32x32xf32>
    %57 = arith.subf %20, %56 : vector<32x32xf32>
    %cst_25 = arith.constant 9.99999974E-6 : f32
    %58 = vector.broadcast %cst_25 : f32 to vector<32x1xf32>
    %59 = arith.addf %55, %58 : vector<32x1xf32>
    %60 = math.rsqrt %59 : vector<32x1xf32>
    %61 = vector.broadcast %60 : vector<32x1xf32> to vector<32x32xf32>
    %62 = arith.mulf %57, %61 : vector<32x32xf32>
    %cst_26 = arith.constant dense<0.000000e+00> : vector<32x64xf32>
    %63 = tpu.matmul %62, %3, %cst_26 {dimension_numbers = #tpu.dot_dimension_numbers<[1], [0], [0], [1], [0, 0, 1, 1], [], []>} : vector<32x32xf32>, vector<32x64xf32>, vector<32x64xf32> -> vector<32x64xf32>
    %64 = vector.broadcast %9 : vector<1x64xf32> to vector<32x64xf32>
    %65 = arith.addf %63, %64 : vector<32x64xf32>
    %66 = vector.extract_strided_slice %65 {offsets = [0, 0], sizes = [32, 32], strides = [1, 1]} : vector<32x64xf32> to vector<32x32xf32>
    %67 = vector.extract_strided_slice %65 {offsets = [0, 32], sizes = [32, 32], strides = [1, 1]} : vector<32x64xf32> to vector<32x32xf32>
    %68 = tpu.iota {dimensions = array<i32: 0>} : vector<16x32xi32>
    %69 = tpu.iota {dimensions = array<i32: 1>} : vector<16x32xi32>
    %c3_i32 = arith.constant 3 : i32
    %70 = vector.broadcast %c3_i32 : i32 to vector<16x32xi32>
    %71 = arith.shrsi %68, %70 : vector<16x32xi32>
    %c7_i32 = arith.constant 7 : i32
    %72 = vector.broadcast %c7_i32 : i32 to vector<16x32xi32>
    %73 = arith.andi %68, %72 : vector<16x32xi32>
    %c8_i32 = arith.constant 8 : i32
    %74 = vector.broadcast %c8_i32 : i32 to vector<16x32xi32>
    %75 = arith.addi %73, %74 : vector<16x32xi32>
    %c4_i32 = arith.constant 4 : i32
    %76 = vector.broadcast %c4_i32 : i32 to vector<16x32xi32>
    %77 = arith.shrsi %69, %76 : vector<16x32xi32>
    %c15_i32 = arith.constant 15 : i32
    %78 = vector.broadcast %c15_i32 : i32 to vector<16x32xi32>
    %79 = arith.andi %69, %78 : vector<16x32xi32>
    %c0_27 = arith.constant 0 : index
    %c0_28 = arith.constant 0 : index
    %80 = vector.load %arg1[%c0_27, %c0_28] : memref<1x32xf32, #tpu.memory_space<vmem>>, vector<1x32xf32>
    %cst_29 = arith.constant 5.000000e-01 : f32
    %81 = vector.broadcast %cst_29 : f32 to vector<1x32xf32>
    %82 = arith.cmpf ogt, %80, %81 : vector<1x32xf32>
    %83 = arith.cmpi eq, %71, %77 : vector<16x32xi32>
    %84 = arith.cmpi sle, %79, %75 : vector<16x32xi32>
    %85 = arith.andi %83, %84 : vector<16x32xi1>
    %86 = vector.broadcast %82 : vector<1x32xi1> to vector<16x32xi1>
    %87 = arith.andi %85, %86 : vector<16x32xi1>
    %cst_30 = arith.constant 0.000000e+00 : f32
    %cst_31 = arith.constant -1.000000e+30 : f32
    %88 = vector.broadcast %cst_30 : f32 to vector<16x32xf32>
    %89 = vector.broadcast %cst_31 : f32 to vector<16x32xf32>
    %90 = arith.select %87, %88, %89 : vector<16x32xi1>, vector<16x32xf32>
    %91 = vector.extract_strided_slice %44 {offsets = [0, 0], sizes = [16, 16], strides = [1, 1]} : vector<16x32xf32> to vector<16x16xf32>
    %92 = vector.extract_strided_slice %66 {offsets = [0, 0], sizes = [32, 16], strides = [1, 1]} : vector<32x32xf32> to vector<32x16xf32>
    %93 = vector.extract_strided_slice %67 {offsets = [0, 0], sizes = [32, 16], strides = [1, 1]} : vector<32x32xf32> to vector<32x16xf32>
    %cst_32 = arith.constant dense<0.000000e+00> : vector<16x32xf32>
    %94 = tpu.matmul %91, %92, %cst_32 {dimension_numbers = #tpu.dot_dimension_numbers<[1], [1], [0], [0], [0, 0, 1, 0], [], []>} : vector<16x16xf32>, vector<32x16xf32>, vector<16x32xf32> -> vector<16x32xf32>
    %95 = arith.addf %94, %90 : vector<16x32xf32>
    %cst_33 = arith.constant dense<0xFF800000> : vector<16xf32>
    %96 = vector.multi_reduction <maximumf>, %95, %cst_33 [1] : vector<16x32xf32> to vector<16xf32>
    %97 = vector.shape_cast %96 : vector<16xf32> to vector<16x1xf32>
    %98 = vector.broadcast %97 : vector<16x1xf32> to vector<16x32xf32>
    %99 = arith.subf %95, %98 : vector<16x32xf32>
    %100 = math.exp %99 : vector<16x32xf32>
    %cst_34 = arith.constant dense<0.000000e+00> : vector<16xf32>
    %101 = vector.multi_reduction <add>, %100, %cst_34 [1] : vector<16x32xf32> to vector<16xf32>
    %102 = vector.shape_cast %101 : vector<16xf32> to vector<16x1xf32>
    %103 = vector.broadcast %102 : vector<16x1xf32> to vector<16x32xf32>
    %104 = arith.divf %100, %103 : vector<16x32xf32>
    %cst_35 = arith.constant dense<0.000000e+00> : vector<16x16xf32>
    %105 = tpu.matmul %104, %93, %cst_35 {dimension_numbers = #tpu.dot_dimension_numbers<[1], [0], [0], [1], [0, 0, 1, 1], [], []>} : vector<16x32xf32>, vector<32x16xf32>, vector<16x16xf32> -> vector<16x16xf32>
    %106 = vector.extract_strided_slice %44 {offsets = [0, 16], sizes = [16, 16], strides = [1, 1]} : vector<16x32xf32> to vector<16x16xf32>
    %107 = vector.extract_strided_slice %66 {offsets = [0, 16], sizes = [32, 16], strides = [1, 1]} : vector<32x32xf32> to vector<32x16xf32>
    %108 = vector.extract_strided_slice %67 {offsets = [0, 16], sizes = [32, 16], strides = [1, 1]} : vector<32x32xf32> to vector<32x16xf32>
    %cst_36 = arith.constant dense<0.000000e+00> : vector<16x32xf32>
    %109 = tpu.matmul %106, %107, %cst_36 {dimension_numbers = #tpu.dot_dimension_numbers<[1], [1], [0], [0], [0, 0, 1, 0], [], []>} : vector<16x16xf32>, vector<32x16xf32>, vector<16x32xf32> -> vector<16x32xf32>
    %110 = arith.addf %109, %90 : vector<16x32xf32>
    %cst_37 = arith.constant dense<0xFF800000> : vector<16xf32>
    %111 = vector.multi_reduction <maximumf>, %110, %cst_37 [1] : vector<16x32xf32> to vector<16xf32>
    %112 = vector.shape_cast %111 : vector<16xf32> to vector<16x1xf32>
    %113 = vector.broadcast %112 : vector<16x1xf32> to vector<16x32xf32>
    %114 = arith.subf %110, %113 : vector<16x32xf32>
    %115 = math.exp %114 : vector<16x32xf32>
    %cst_38 = arith.constant dense<0.000000e+00> : vector<16xf32>
    %116 = vector.multi_reduction <add>, %115, %cst_38 [1] : vector<16x32xf32> to vector<16xf32>
    %117 = vector.shape_cast %116 : vector<16xf32> to vector<16x1xf32>
    %118 = vector.broadcast %117 : vector<16x1xf32> to vector<16x32xf32>
    %119 = arith.divf %115, %118 : vector<16x32xf32>
    %cst_39 = arith.constant dense<0.000000e+00> : vector<16x16xf32>
    %120 = tpu.matmul %119, %108, %cst_39 {dimension_numbers = #tpu.dot_dimension_numbers<[1], [0], [0], [1], [0, 0, 1, 1], [], []>} : vector<16x32xf32>, vector<32x16xf32>, vector<16x16xf32> -> vector<16x16xf32>
    %121 = tpu.concatenate %105, %120 in 1 : vector<16x16xf32>, vector<16x16xf32> -> vector<16x32xf32>
    %cst_40 = arith.constant dense<0.000000e+00> : vector<16x32xf32>
    %122 = tpu.matmul %121, %4, %cst_40 {dimension_numbers = #tpu.dot_dimension_numbers<[1], [0], [0], [1], [0, 0, 1, 1], [], []>} : vector<16x32xf32>, vector<32x32xf32>, vector<16x32xf32> -> vector<16x32xf32>
    %123 = arith.addf %23, %122 : vector<16x32xf32>
    %cst_41 = arith.constant dense<0.000000e+00> : vector<16xf32>
    %124 = vector.multi_reduction <add>, %123, %cst_41 [1] : vector<16x32xf32> to vector<16xf32>
    %125 = vector.shape_cast %124 : vector<16xf32> to vector<16x1xf32>
    %cst_42 = arith.constant 3.200000e+01 : f32
    %126 = vector.broadcast %cst_42 : f32 to vector<16x1xf32>
    %127 = arith.divf %125, %126 : vector<16x1xf32>
    %128 = vector.broadcast %127 : vector<16x1xf32> to vector<16x32xf32>
    %129 = arith.subf %123, %128 : vector<16x32xf32>
    %130 = arith.mulf %129, %129 : vector<16x32xf32>
    %cst_43 = arith.constant dense<0.000000e+00> : vector<16xf32>
    %131 = vector.multi_reduction <add>, %130, %cst_43 [1] : vector<16x32xf32> to vector<16xf32>
    %132 = vector.shape_cast %131 : vector<16xf32> to vector<16x1xf32>
    %cst_44 = arith.constant 3.200000e+01 : f32
    %133 = vector.broadcast %cst_44 : f32 to vector<16x1xf32>
    %134 = arith.divf %132, %133 : vector<16x1xf32>
    %135 = vector.broadcast %127 : vector<16x1xf32> to vector<16x32xf32>
    %136 = arith.subf %123, %135 : vector<16x32xf32>
    %cst_45 = arith.constant 9.99999974E-6 : f32
    %137 = vector.broadcast %cst_45 : f32 to vector<16x1xf32>
    %138 = arith.addf %134, %137 : vector<16x1xf32>
    %139 = math.rsqrt %138 : vector<16x1xf32>
    %140 = vector.broadcast %139 : vector<16x1xf32> to vector<16x32xf32>
    %141 = arith.mulf %136, %140 : vector<16x32xf32>
    %cst_46 = arith.constant dense<0.000000e+00> : vector<16x128xf32>
    %142 = tpu.matmul %141, %5, %cst_46 {dimension_numbers = #tpu.dot_dimension_numbers<[1], [0], [0], [1], [0, 0, 1, 1], [], []>} : vector<16x32xf32>, vector<32x128xf32>, vector<16x128xf32> -> vector<16x128xf32>
    %143 = vector.broadcast %10 : vector<1x128xf32> to vector<16x128xf32>
    %144 = arith.addf %142, %143 : vector<16x128xf32>
    %cst_47 = arith.constant 5.000000e-01 : f32
    %145 = vector.broadcast %cst_47 : f32 to vector<16x128xf32>
    %146 = arith.mulf %145, %144 : vector<16x128xf32>
    %cst_48 = arith.constant 0.707106769 : f32
    %147 = vector.broadcast %cst_48 : f32 to vector<16x128xf32>
    %148 = arith.mulf %144, %147 : vector<16x128xf32>
    %149 = math.erf %148 : vector<16x128xf32>
    %cst_49 = arith.constant 1.000000e+00 : f32
    %150 = vector.broadcast %cst_49 : f32 to vector<16x128xf32>
    %151 = arith.addf %150, %149 : vector<16x128xf32>
    %152 = arith.mulf %146, %151 : vector<16x128xf32>
    %cst_50 = arith.constant dense<0.000000e+00> : vector<16x32xf32>
    %153 = tpu.matmul %152, %6, %cst_50 {dimension_numbers = #tpu.dot_dimension_numbers<[1], [0], [0], [1], [0, 0, 1, 1], [], []>} : vector<16x128xf32>, vector<128x32xf32>, vector<16x32xf32> -> vector<16x32xf32>
    %154 = arith.addf %123, %153 : vector<16x32xf32>
    %155 = vector.broadcast %11 : vector<1x32xf32> to vector<16x32xf32>
    %156 = arith.addf %154, %155 : vector<16x32xf32>
    %cst_51 = arith.constant dense<0.000000e+00> : vector<16xf32>
    %157 = vector.multi_reduction <add>, %156, %cst_51 [1] : vector<16x32xf32> to vector<16xf32>
    %158 = vector.shape_cast %157 : vector<16xf32> to vector<16x1xf32>
    %cst_52 = arith.constant 3.200000e+01 : f32
    %159 = vector.broadcast %cst_52 : f32 to vector<16x1xf32>
    %160 = arith.divf %158, %159 : vector<16x1xf32>
    %161 = vector.broadcast %160 : vector<16x1xf32> to vector<16x32xf32>
    %162 = arith.subf %156, %161 : vector<16x32xf32>
    %163 = arith.mulf %162, %162 : vector<16x32xf32>
    %cst_53 = arith.constant dense<0.000000e+00> : vector<16xf32>
    %164 = vector.multi_reduction <add>, %163, %cst_53 [1] : vector<16x32xf32> to vector<16xf32>
    %165 = vector.shape_cast %164 : vector<16xf32> to vector<16x1xf32>
    %cst_54 = arith.constant 3.200000e+01 : f32
    %166 = vector.broadcast %cst_54 : f32 to vector<16x1xf32>
    %167 = arith.divf %165, %166 : vector<16x1xf32>
    %168 = vector.broadcast %160 : vector<16x1xf32> to vector<16x32xf32>
    %169 = arith.subf %156, %168 : vector<16x32xf32>
    %cst_55 = arith.constant 9.99999974E-6 : f32
    %170 = vector.broadcast %cst_55 : f32 to vector<16x1xf32>
    %171 = arith.addf %167, %170 : vector<16x1xf32>
    %172 = math.rsqrt %171 : vector<16x1xf32>
    %173 = vector.broadcast %172 : vector<16x1xf32> to vector<16x32xf32>
    %174 = arith.mulf %169, %173 : vector<16x32xf32>
    %cst_56 = arith.constant dense<0.000000e+00> : vector<16x128xf32>
    %175 = tpu.matmul %174, %7, %cst_56 {dimension_numbers = #tpu.dot_dimension_numbers<[1], [0], [0], [1], [0, 0, 1, 1], [], []>} : vector<16x32xf32>, vector<32x128xf32>, vector<16x128xf32> -> vector<16x128xf32>
    %176 = vector.broadcast %12 : vector<1x128xf32> to vector<16x128xf32>
    %177 = arith.addf %175, %176 : vector<16x128xf32>
    %c0_57 = arith.constant 0 : index
    %c0_58 = arith.constant 0 : index
    %178 = vector.load %arg3[%c0_57, %c0_58] : memref<16x128xf32, #tpu.memory_space<vmem>>, vector<16x128xf32>
    tpu.vector_store %arg3[%c0_57, %c0_58], %177 {strides = array<i32>} : memref<16x128xf32, #tpu.memory_space<vmem>>, vector<16x128xf32>,
    return
  }
}

</mosaic_0001>

<llo_original>
// kernel: _perceiver_ar_forward.1
$region0: #{_perceiver_ar_forward.1}
  #allocation0 [shape = 'u32[]', space=smem, size = 0x4, offset = 0x4, fixed_abs, tag = 'smem constant byte address 0x4 - core index']
  #allocation1 [shape = 'u32[144,128]{1,0:T(1,128)}', space=vmem, size = 0x12000, scoped, tag = 'internal scratch']
  %s0 = inlined_call_operand.vmem [shape: s32[32,1], index: 0, kind: input, shape index: {}]
  %s1 = inlined_call_operand.vmem [shape: f32[1,32], index: 1, kind: input, shape index: {}]
  %s2 = inlined_call_operand.hbm [shape: f32[392,128], index: 2, kind: input, shape index: {}]
  %s3 = inlined_call_operand.vmem [shape: f32[16,128], index: 3, kind: output, shape index: {}]
  %s4 = sld [smem:[#allocation0]]
  $region26: #{_perceiver_ar_forward.1} parent=0
    _
  %s6 = ssub.s32 1, %s4
  %s7 = scalar_select 0, %s6, %s4
  $region1: #{_perceiver_ar_forward.1} parent=0
    #allocation2 [shape = 'u8[200704]{0}', space=vmem, size = 0x31000, scoped, tag = 'input window, operand 2, single buffered']
    #allocation3 [shape = 's32[1]{0}', space=sflag, size = 0x4, scoped, tag = 'scoped memory for _perceiver_ar_forward.1']
    %8 = vsyncpa [#allocation3], 0
    // Predicated region
    $region2: #{_perceiver_ar_forward.1} parent=1 // pred_check
      _
    $region3: #{_perceiver_ar_forward.1} parent=1 // pred_check_branch
      %10 = sbr.rel (0) target = $region5
    $region4: #{_perceiver_ar_forward.1} parent=1 // pred_region
      _
    $region5: #{_perceiver_ar_forward.1} parent=1 // pred_fallthru
      _
    // Predicated region
    $region6: #{_perceiver_ar_forward.1} parent=1 // pred_check
      _
    $region7: #{_perceiver_ar_forward.1} parent=1 // pred_check_branch
      %12 = sbr.rel (0) target = $region9
    $region8: #{_perceiver_ar_forward.1} parent=1 // pred_region
      _
    $region9: #{_perceiver_ar_forward.1} parent=1 // pred_fallthru
      _
    // Predicated region
    $region10: #{_perceiver_ar_forward.1} parent=1 // pred_check
      _
    $region11: #{_perceiver_ar_forward.1} parent=1 // pred_check_branch
      %14 = sbr.rel (0) target = $region13
    $region12: #{_perceiver_ar_forward.1} parent=1 // pred_region
      %s16 = ssub.s32 6272, 6272
      %17 = vsyncadd [#allocation3], %s16
      %s18 = sshll.u32 [#allocation2], 4
      %s19 = int_to_ptr.vmem [resolvable:$true] %s18
      %24 = dma.hbm_to_vmem [thread:$0]  %s2, 6272, %s19, [#allocation3], 128, 128, 8
    $region13: #{_perceiver_ar_forward.1} parent=1 // pred_fallthru
      _
    // Predicated region
    $region14: #{_perceiver_ar_forward.1} parent=1 // pred_check
      _
    $region15: #{_perceiver_ar_forward.1} parent=1 // pred_check_branch
      %26 = sbr.rel (0) target = $region17
    $region16: #{_perceiver_ar_forward.1} parent=1 // pred_region
      %27 = dma.done [#allocation3], 6272
    $region17: #{_perceiver_ar_forward.1} parent=1 // pred_fallthru
      _
    %v28 = vld [vmem:[#allocation2] sm:$0xff]
    %v29 = vld [vmem:[#allocation2 + $0x8] sm:$0xff]
    %v30 = vld [vmem:[#allocation2 + $0x10] sm:$0xff]
    %v31 = vld [vmem:[#allocation2 + $0x18] sm:$0xff]
    %v32 = vld [vmem:[#allocation2 + $0x20] sm:$0xff]
    %v33 = vld [vmem:[#allocation2 + $0x28] sm:$0xff]
    %v34 = vld [vmem:[#allocation2 + $0x30] sm:$0xff]
    %v35 = vld [vmem:[#allocation2 + $0x38] sm:$0xff]
    %v36 = vld [vmem:[#allocation2 + $0x40] sm:$0xff]
    %v37 = vld [vmem:[#allocation2 + $0x48] sm:$0xff]
    %v38 = vld [vmem:[#allocation2 + $0x50] sm:$0xff]
    %v39 = vld [vmem:[#allocation2 + $0x58] sm:$0xff]
    %v40 = vld [vmem:[#allocation2 + $0x60] sm:$0xff]
    %v41 = vld [vmem:[#allocation2 + $0x68] sm:$0xff]
    %v42 = vld [vmem:[#allocation2 + $0x70] sm:$0xff]
    %v43 = vld [vmem:[#allocation2 + $0x78] sm:$0xff]
    %v44 = vld [vmem:[#allocation2 + $0x80] sm:$0xff]
    %v45 = vld [vmem:[#allocation2 + $0x88] sm:$0xff]
    %v46 = vld [vmem:[#allocation2 + $0x90] sm:$0xff]
    %v47 = vld [vmem:[#allocation2 + $0x98] sm:$0xff]
    %v48 = vld [vmem:[#allocation2 + $0xa0] sm:$0xff]
    %v49 = vld [vmem:[#allocation2 + $0xa8] sm:$0xff]
    %v50 = vld [vmem:[#allocation2 + $0xb0] sm:$0xff]
    %v51 = vld [vmem:[#allocation2 + $0xb8] sm:$0xff]
    %v52 = vld [vmem:[#allocation2 + $0xc0] sm:$0xff]
    %v53 = vld [vmem:[#allocation2 + $0xc8] sm:$0xff]
    %v54 = vld [vmem:[#allocation2 + $0xd0] sm:$0xff]
    %v55 = vld [vmem:[#allocation2 + $0xd8] sm:$0xff]
    %v56 = vld [vmem:[#allocation2 + $0xe0] sm:$0xff]
    %v57 = vld [vmem:[#allocation2 + $0xe8] sm:$0xff]
    %v58 = vld [vmem:[#allocation2 + $0xf0] sm:$0xff]
    %v59 = vld [vmem:[#allocation2 + $0xf8] sm:$0xff]
    %v60 = vld [vmem:[#allocation2 + $0x100] sm:$0xff]
    %v61 = vld [vmem:[#allocation2 + $0x108] sm:$0xff]
    %v62 = vld [vmem:[#allocation2 + $0x110] sm:$0xff]
    %v63 = vld [vmem:[#allocation2 + $0x118] sm:$0xff]
    %v64 = vld [vmem:[#allocation2 + $0x120] sm:$0xff]
    %v65 = vld [vmem:[#allocation2 + $0x128] sm:$0xff]
    %v66 = vld [vmem:[#allocation2 + $0x130] sm:$0xff]
    %v67 = vld [vmem:[#allocation2 + $0x138] sm:$0xff]
    %v68 = vld [vmem:[#allocation2 + $0x140] sm:$0xff]
    %v69 = vld [vmem:[#allocation2 + $0x148] sm:$0xff]
    %v70 = vld [vmem:[#allocation2 + $0x150] sm:$0xff]
    %v71 = vld [vmem:[#allocation2 + $0x158] sm:$0xff]
    %v72 = vld [vmem:[#allocation2 + $0x160] sm:$0xff]
    %v73 = vld [vmem:[#allocation2 + $0x168] sm:$0xff]
    %v74 = vld [vmem:[#allocation2 + $0x170] sm:$0xff]
    %v75 = vld [vmem:[#allocation2 + $0x178] sm:$0xff]
    %v76 = vld [vmem:[#allocation2 + $0x180] sm:$0x1]
    %v77 = vld [vmem:[#allocation2 + $0x181] sm:$0x1]
    %v78 = vld [vmem:[#allocation2 + $0x182] sm:$0x1]
    %v79 = vld [vmem:[#allocation2 + $0x183] sm:$0x1]
    %v80 = vld [vmem:[#allocation2 + $0x184] sm:$0x1]
    %v81 = vlaneseq
    %v82 = vand.u32 %v81, 127
    %v83 = vld [vmem:[%s0] sm:$0xff]
    %v84 = vld [vmem:[%s0 + $0x8] sm:$0xff]
    %v85 = vld [vmem:[%s0 + $0x10] sm:$0xff]
    %v86 = vld [vmem:[%s0 + $0x18] sm:$0xff]
    %87 = vset.pattern.permute.xlu0 0
    %88 = vperm.xlu0 %87, %v83
    %v89 = vpop.permute.xlu0 %88
    %90 = vset.pattern.permute.xlu0 0
    %91 = vperm.xlu0 %90, %v84
    %v92 = vpop.permute.xlu0 %91
    %93 = vset.pattern.permute.xlu0 0
    %94 = vperm.xlu0 %93, %v85
    %v95 = vpop.permute.xlu0 %94
    %96 = vset.pattern.permute.xlu0 0
    %97 = vperm.xlu0 %96, %v86
    %v98 = vpop.permute.xlu0 %97
    %vm99 = vcmp.eq.s32.totalorder %v82, %v89
    %vm100 = vcmp.eq.s32.totalorder %v82, %v92
    %vm101 = vcmp.eq.s32.totalorder %v82, %v95
    %vm102 = vcmp.eq.s32.totalorder %v82, %v98
    %v103 = vsel %vm99, 1, 0
    %v104 = vsel %vm100, 1, 0
    %v105 = vsel %vm101, 1, 0
    %v106 = vsel %vm102, 1, 0
    %v107 = vcvt.s32.f32 %v103
    %v108 = vcvt.s32.f32 %v104
    %v109 = vcvt.s32.f32 %v105
    %v110 = vcvt.s32.f32 %v106
    %vm111 = vcmask 523264
    %v113 = vsel %vm111, %v107, 0
    %v116 = vsel %vm111, %v108, 0
    %v119 = vsel %vm111, %v109, 0
    %v122 = vsel %vm111, %v110, 0
    %124 = vmatprep.subr.mxu0 0.0
    %125 = vmatpush1.msra.mxu0 %v28
    %126 = vmatprep.subr.mxu0 0.0
    %127 = vmatpush1.msra.mxu0 %v29
    %128 = vmatprep.subr.mxu0 0.0
    %129 = vmatpush1.msra.mxu0 %v30
    %130 = vmatprep.subr.mxu0 0.0
    %131 = vmatpush1.msra.mxu0 %v31
    %132 = vmatprep.subr.mxu0 0.0
    %133 = vmatpush1.msra.mxu0 %v32
    %134 = vmatprep.subr.mxu0 0.0
    %135 = vmatpush1.msra.mxu0 %v33
    %136 = vmatprep.subr.mxu0 0.0
    %137 = vmatpush1.msra.mxu0 %v34
    %138 = vmatprep.subr.mxu0 0.0
    %139 = vmatpush1.msra.mxu0 %v35
    %140 = vmatprep.subr.mxu0 0.0
    %141 = vmatpush1.msra.mxu0 0.0
    %142 = vmatprep.subr.mxu0 0.0
    %143 = vmatpush1.msra.mxu0 0.0
    %144 = vmatprep.subr.mxu0 0.0
    %145 = vmatpush1.msra.mxu0 0.0
    %146 = vmatprep.subr.mxu0 0.0
    %147 = vmatpush1.msra.mxu0 0.0
    %148 = vmatprep.subr.mxu0 0.0
    %149 = vmatpush1.msra.mxu0 0.0
    %150 = vmatprep.subr.mxu0 0.0
    %151 = vmatpush1.msra.mxu0 0.0
    %152 = vmatprep.subr.mxu0 0.0
    %153 = vmatpush1.msra.mxu0 0.0
    %154 = vmatprep.subr.mxu0 0.0
    %155 = vmatpush1.msra.mxu0 0.0
    %156 = vmatprep.subr.mxu0 0.0
    %157 = vmatpush1.msra.mxu0 0.0
    %158 = vmatprep.subr.mxu0 0.0
    %159 = vmatpush1.msra.mxu0 0.0
    %160 = vmatprep.subr.mxu0 0.0
    %161 = vmatpush1.msra.mxu0 0.0
    %162 = vmatprep.subr.mxu0 0.0
    %163 = vmatpush1.msra.mxu0 0.0
    %164 = vmatprep.subr.mxu0 0.0
    %165 = vmatpush1.msra.mxu0 0.0
    %166 = vmatprep.subr.mxu0 0.0
    %167 = vmatpush1.msra.mxu0 0.0
    %168 = vmatprep.subr.mxu0 0.0
    %169 = vmatpush1.msra.mxu0 0.0
    %170 = vmatprep.subr.mxu0 0.0
    %171 = vmatpush1.msra.mxu0 0.0
    %172 = vmatprep.subr.mxu0 0.0
    %173 = vmatpush1.msra.mxu0 0.0
    %174 = vmatprep.subr.mxu0 0.0
    %175 = vmatpush1.msra.mxu0 0.0
    %176 = vmatprep.subr.mxu0 0.0
    %177 = vmatpush1.msra.mxu0 0.0
    %178 = vmatprep.subr.mxu0 0.0
    %179 = vmatpush1.msra.mxu0 0.0
    %180 = vmatprep.subr.mxu0 0.0
    %181 = vmatpush1.msra.mxu0 0.0
    %182 = vmatprep.subr.mxu0 0.0
    %183 = vmatpush1.msra.mxu0 0.0
    %184 = vmatprep.subr.mxu0 0.0
    %185 = vmatpush1.msra.mxu0 0.0
    %186 = vmatprep.subr.mxu0 0.0
    %187 = vmatpush1.msra.mxu0 0.0
    %188 = vmatprep.mubr.f32.mxu0 0.0
    %189 = vmatmul.mubr.f32.gmra.mrb[0].mxu0 %v113
    %v190 = vpop.f32.mrb[0].mxu0
    %v191 = vadd.f32 %v36, %v190
    %v192 = vpop.f32.mrb[0].mxu0
    %193 = vmatprep.mubr.f32.mxu0 0.0
    %194 = vmatmul.mubr.f32.gmra.mrb[0].mxu0 %v116
    %v195 = vpop.f32.mrb[0].mxu0
    %v196 = vadd.f32 %v37, %v195
    %v197 = vpop.f32.mrb[0].mxu0
    %198 = vmatprep.mubr.f32.mxu0 0.0
    %199 = vmatmul.mubr.f32.gmra.mrb[0].mxu0 %v119
    %v200 = vpop.f32.mrb[0].mxu0
    %v201 = vadd.f32 %v38, %v200
    %v202 = vpop.f32.mrb[0].mxu0
    %203 = vmatprep.mubr.f32.mxu0 0.0
    %204 = vmatmul.mubr.f32.gmra.mrb[0].mxu0 %v122
    %v205 = vpop.f32.mrb[0].mxu0
    %v206 = vadd.f32 %v39, %v205
    %v207 = vpop.f32.mrb[0].mxu0
    %208 = vdwg.mxu0
    %vm209 = vcmask 261120
    %v210 = vsel %vm209, %v196, 0.0
    %211 = vadd.xlane.f32.xlu0 %v210
    %v212 = vpop.xlane.xlu0 %211
    %v213 = vsel %vm209, %v206, 0.0
    %214 = vadd.xlane.f32.xlu0 %v213
    %v215 = vpop.xlane.xlu0 %214
    %v216 = vrcp.pop 32.0
    %v217 = vmul.f32 %v212, %v216
    %v218 = vmul.f32 %v215, %v216
    %v219 = vsub.f32 %v196, %v217
    %v220 = vsub.f32 %v206, %v218
    %v221 = vmul.f32 %v219, %v219
    %v222 = vmul.f32 %v220, %v220
    %v223 = vsel %vm209, %v221, 0.0
    %224 = vadd.xlane.f32.xlu0 %v223
    %v225 = vpop.xlane.xlu0 %224
    %v226 = vsel %vm209, %v222, 0.0
    %227 = vadd.xlane.f32.xlu0 %v226
    %v228 = vpop.xlane.xlu0 %227
    %v229 = vmul.f32 %v225, %v216
    %v230 = vmul.f32 %v228, %v216
    %v231 = vadd.f32 %v229, 1e-05
    %v232 = vadd.f32 %v230, 1e-05
    %v233 = vrsqrt.pop %v231
    %v234 = vrsqrt.pop %v232
    %v235 = vmul.f32 %v219, %v233
    %v236 = vmul.f32 %v220, %v234
    %v237 = vlaneseq
    %v238 = vshrl.u32 %v237, 7
    %v239 = vsub.s32 0, %v238
    %v240 = vrot.slane %v76, %v239
    %v242 = vsel %vm209, %v235, 0
    %v245 = vsel %vm209, %v236, 0
    %247 = vmatprep.subr.mxu0 0.0
    %248 = vmatpush1.msra.mxu0 %v40
    %249 = vmatprep.subr.mxu0 0.0
    %250 = vmatpush1.msra.mxu0 %v41
    %251 = vmatprep.subr.mxu0 0.0
    %252 = vmatpush1.msra.mxu0 %v42
    %253 = vmatprep.subr.mxu0 0.0
    %254 = vmatpush1.msra.mxu0 %v43
    %255 = vmatprep.subr.mxu0 0.0
    %256 = vmatpush1.msra.mxu0 0.0
    %257 = vmatprep.subr.mxu0 0.0
    %258 = vmatpush1.msra.mxu0 0.0
    %259 = vmatprep.subr.mxu0 0.0
    %260 = vmatpush1.msra.mxu0 0.0
    %261 = vmatprep.subr.mxu0 0.0
    %262 = vmatpush1.msra.mxu0 0.0
    %263 = vmatprep.subr.mxu0 0.0
    %264 = vmatpush1.msra.mxu0 0.0
    %265 = vmatprep.subr.mxu0 0.0
    %266 = vmatpush1.msra.mxu0 0.0
    %267 = vmatprep.subr.mxu0 0.0
    %268 = vmatpush1.msra.mxu0 0.0
    %269 = vmatprep.subr.mxu0 0.0
    %270 = vmatpush1.msra.mxu0 0.0
    %271 = vmatprep.subr.mxu0 0.0
    %272 = vmatpush1.msra.mxu0 0.0
    %273 = vmatprep.subr.mxu0 0.0
    %274 = vmatpush1.msra.mxu0 0.0
    %275 = vmatprep.subr.mxu0 0.0
    %276 = vmatpush1.msra.mxu0 0.0
    %277 = vmatprep.subr.mxu0 0.0
    %278 = vmatpush1.msra.mxu0 0.0
    %279 = vmatprep.subr.mxu0 0.0
    %280 = vmatpush1.msra.mxu0 0.0
    %281 = vmatprep.subr.mxu0 0.0
    %282 = vmatpush1.msra.mxu0 0.0
    %283 = vmatprep.subr.mxu0 0.0
    %284 = vmatpush1.msra.mxu0 0.0
    %285 = vmatprep.subr.mxu0 0.0
    %286 = vmatpush1.msra.mxu0 0.0
    %287 = vmatprep.subr.mxu0 0.0
    %288 = vmatpush1.msra.mxu0 0.0
    %289 = vmatprep.subr.mxu0 0.0
    %290 = vmatpush1.msra.mxu0 0.0
    %291 = vmatprep.subr.mxu0 0.0
    %292 = vmatpush1.msra.mxu0 0.0
    %293 = vmatprep.subr.mxu0 0.0
    %294 = vmatpush1.msra.mxu0 0.0
    %295 = vmatprep.subr.mxu0 0.0
    %296 = vmatpush1.msra.mxu0 0.0
    %297 = vmatprep.subr.mxu0 0.0
    %298 = vmatpush1.msra.mxu0 0.0
    %299 = vmatprep.subr.mxu0 0.0
    %300 = vmatpush1.msra.mxu0 0.0
    %301 = vmatprep.subr.mxu0 0.0
    %302 = vmatpush1.msra.mxu0 0.0
    %303 = vmatprep.subr.mxu0 0.0
    %304 = vmatpush1.msra.mxu0 0.0
    %305 = vmatprep.subr.mxu0 0.0
    %306 = vmatpush1.msra.mxu0 0.0
    %307 = vmatprep.subr.mxu0 0.0
    %308 = vmatpush1.msra.mxu0 0.0
    %309 = vmatprep.subr.mxu0 0.0
    %310 = vmatpush1.msra.mxu0 0.0
    %311 = vmatprep.mubr.f32.mxu0 0.0
    %312 = vmatmul.mubr.f32.gmra.mrb[0].mxu0 %v242
    %v313 = vpop.f32.mrb[0].mxu0
    %v314 = vadd.f32 %v240, %v313
    %v315 = vpop.f32.mrb[0].mxu0
    %316 = vmatprep.mubr.f32.mxu0 0.0
    %317 = vmatmul.mubr.f32.gmra.mrb[0].mxu0 %v245
    %v318 = vpop.f32.mrb[0].mxu0
    %v319 = vadd.f32 %v240, %v318
    %v320 = vpop.f32.mrb[0].mxu0
    %321 = vdwg.mxu0
    %v322 = vsel %vm209, %v191, 0.0
    %323 = vadd.xlane.f32.xlu0 %v322
    %v324 = vpop.xlane.xlu0 %323
    %v325 = vsel %vm209, %v201, 0.0
    %326 = vadd.xlane.f32.xlu0 %v325
    %v327 = vpop.xlane.xlu0 %326
    %v328 = vmul.f32 %v324, %v216
    %v329 = vmul.f32 %v327, %v216
    %v330 = vsub.f32 %v191, %v328
    %v331 = vsub.f32 %v201, %v329
    %v332 = vmul.f32 %v330, %v330
    %v333 = vmul.f32 %v331, %v331
    %v334 = vsel %vm209, %v332, 0.0
    %335 = vadd.xlane.f32.xlu0 %v334
    %v336 = vpop.xlane.xlu0 %335
    %v337 = vsel %vm209, %v333, 0.0
    %338 = vadd.xlane.f32.xlu0 %v337
    %v339 = vpop.xlane.xlu0 %338
    %v340 = vmul.f32 %v336, %v216
    %v341 = vmul.f32 %v339, %v216
    %v342 = vadd.f32 %v340, 1e-05
    %v343 = vadd.f32 %v341, 1e-05
    %v344 = vrsqrt.pop %v342
    %v345 = vrsqrt.pop %v343
    %v346 = vmul.f32 %v330, %v344
    %v347 = vmul.f32 %v331, %v345
    %v348 = vlaneseq
    %v349 = vshrl.u32 %v348, 7
    %v350 = vsub.s32 0, %v349
    %v351 = vrot.slane %v77, %v350
    %v353 = vsel %vm209, %v346, 0
    %v356 = vsel %vm209, %v347, 0
    %358 = vmatprep.subr.mxu0 0.0
    %359 = vmatpush1.msra.mxu0 %v44
    %360 = vmatprep.subr.mxu0 0.0
    %361 = vmatpush1.msra.mxu0 %v45
    %362 = vmatprep.subr.mxu0 0.0
    %363 = vmatpush1.msra.mxu0 %v46
    %364 = vmatprep.subr.mxu0 0.0
    %365 = vmatpush1.msra.mxu0 %v47
    %366 = vmatprep.subr.mxu0 0.0
    %367 = vmatpush1.msra.mxu0 0.0
    %368 = vmatprep.subr.mxu0 0.0
    %369 = vmatpush1.msra.mxu0 0.0
    %370 = vmatprep.subr.mxu0 0.0
    %371 = vmatpush1.msra.mxu0 0.0
    %372 = vmatprep.subr.mxu0 0.0
    %373 = vmatpush1.msra.mxu0 0.0
    %374 = vmatprep.subr.mxu0 0.0
    %375 = vmatpush1.msra.mxu0 0.0
    %376 = vmatprep.subr.mxu0 0.0
    %377 = vmatpush1.msra.mxu0 0.0
    %378 = vmatprep.subr.mxu0 0.0
    %379 = vmatpush1.msra.mxu0 0.0
    %380 = vmatprep.subr.mxu0 0.0
    %381 = vmatpush1.msra.mxu0 0.0
    %382 = vmatprep.subr.mxu0 0.0
    %383 = vmatpush1.msra.mxu0 0.0
    %384 = vmatprep.subr.mxu0 0.0
    %385 = vmatpush1.msra.mxu0 0.0
    %386 = vmatprep.subr.mxu0 0.0
    %387 = vmatpush1.msra.mxu0 0.0
    %388 = vmatprep.subr.mxu0 0.0
    %389 = vmatpush1.msra.mxu0 0.0
    %390 = vmatprep.subr.mxu0 0.0
    %391 = vmatpush1.msra.mxu0 0.0
    %392 = vmatprep.subr.mxu0 0.0
    %393 = vmatpush1.msra.mxu0 0.0
    %394 = vmatprep.subr.mxu0 0.0
    %395 = vmatpush1.msra.mxu0 0.0
    %396 = vmatprep.subr.mxu0 0.0
    %397 = vmatpush1.msra.mxu0 0.0
    %398 = vmatprep.subr.mxu0 0.0
    %399 = vmatpush1.msra.mxu0 0.0
    %400 = vmatprep.subr.mxu0 0.0
    %401 = vmatpush1.msra.mxu0 0.0
    %402 = vmatprep.subr.mxu0 0.0
    %403 = vmatpush1.msra.mxu0 0.0
    %404 = vmatprep.subr.mxu0 0.0
    %405 = vmatpush1.msra.mxu0 0.0
    %406 = vmatprep.subr.mxu0 0.0
    %407 = vmatpush1.msra.mxu0 0.0
    %408 = vmatprep.subr.mxu0 0.0
    %409 = vmatpush1.msra.mxu0 0.0
    %410 = vmatprep.subr.mxu0 0.0
    %411 = vmatpush1.msra.mxu0 0.0
    %412 = vmatprep.subr.mxu0 0.0
    %413 = vmatpush1.msra.mxu0 0.0
    %414 = vmatprep.subr.mxu0 0.0
    %415 = vmatpush1.msra.mxu0 0.0
    %416 = vmatprep.subr.mxu0 0.0
    %417 = vmatpush1.msra.mxu0 0.0
    %418 = vmatprep.subr.mxu0 0.0
    %419 = vmatpush1.msra.mxu0 0.0
    %420 = vmatprep.subr.mxu0 0.0
    %421 = vmatpush1.msra.mxu0 0.0
    %422 = vmatprep.mubr.f32.mxu0 0.0
    %423 = vmatmul.mubr.f32.gmra.mrb[0].mxu0 %v353
    %v424 = vpop.f32.mrb[0].mxu0
    %v425 = vadd.f32 %v351, %v424
    %v426 = vpop.f32.mrb[0].mxu0
    %427 = vmatprep.mubr.f32.mxu0 0.0
    %428 = vmatmul.mubr.f32.gmra.mrb[0].mxu0 %v242
    %v429 = vpop.f32.mrb[0].mxu0
    %v430 = vadd.f32 %v351, %v429
    %v431 = vpop.f32.mrb[0].mxu0
    %432 = vmatprep.mubr.f32.mxu0 0.0
    %433 = vmatmul.mubr.f32.gmra.mrb[0].mxu0 %v356
    %v434 = vpop.f32.mrb[0].mxu0
    %v435 = vadd.f32 %v351, %v434
    %v436 = vpop.f32.mrb[0].mxu0
    %437 = vmatprep.mubr.f32.mxu0 0.0
    %438 = vmatmul.mubr.f32.gmra.mrb[0].mxu0 %v245
    %v439 = vpop.f32.mrb[0].mxu0
    %v440 = vadd.f32 %v351, %v439
    %v441 = vpop.f32.mrb[0].mxu0
    %442 = vdwg.mxu0
    %v443 = vlaneseq
    %v444 = vshrl.u32 %v443, 7
    %v445 = vadd.s32 %v444, 8
    %v446 = vshra.s32 %v444, 3
    %v447 = vshra.s32 %v445, 3
    %v448 = vand.u32 %v444, 7
    %v449 = vand.u32 %v445, 7
    %v450 = vadd.s32 %v448, 8
    %v451 = vadd.s32 %v449, 8
    %v452 = vshra.s32 %v82, 4
    %v453 = vand.u32 %v82, 15
    %v454 = vld [vmem:[%s1] sm:$0x1]
    %vm455 = vcmp.gt.f32.partialorder %v454, 0.5
    %vm456 = vcmp.eq.s32.totalorder %v446, %v452
    %vm457 = vcmp.eq.s32.totalorder %v447, %v452
    %vm458 = vcmp.le.s32.totalorder %v453, %v450
    %vm459 = vcmp.le.s32.totalorder %v453, %v451
    %vm460 = vmand %vm456, %vm458
    %vm461 = vmand %vm457, %vm459
    %v462 = vsel %vm455, 1, 0
    %v463 = vlaneseq
    %v464 = vshrl.u32 %v463, 7
    %v465 = vsub.s32 0, %v464
    %v466 = vrot.slane %v462, %v465
    %vm467 = vcmp.eq.s32.totalorder %v466, 1
    %vm468 = vmand %vm460, %vm467
    %vm469 = vmand %vm461, %vm467
    %v470 = vsel %vm468, 0.0, -1e+30
    %v471 = vsel %vm469, 0.0, -1e+30
    %vm472 = vcmask 130048
    %v474 = vsel %vm472, %v314, 0
    %v477 = vsel %vm472, %v319, 0
    %v480 = vsel %vm472, %v425, 0
    %v483 = vsel %vm472, %v430, 0
    %v486 = vsel %vm472, %v435, 0
    %v489 = vsel %vm472, %v440, 0
    %491 = vmatprep.subr.mxu0 0.0
    %492 = vmatpush1.xpose.msra.mxu0 %v480
    %493 = vmatprep.subr.mxu0 0.0
    %494 = vmatpush1.xpose.msra.mxu0 %v483
    %495 = vmatprep.subr.mxu0 0.0
    %496 = vmatpush1.xpose.msra.mxu0 %v486
    %497 = vmatprep.subr.mxu0 0.0
    %498 = vmatpush1.xpose.msra.mxu0 %v489
    %499 = vmatprep.subr.mxu0 0.0
    %500 = vmatpush1.xpose.msra.mxu0 0.0
    %501 = vmatprep.subr.mxu0 0.0
    %502 = vmatpush1.xpose.msra.mxu0 0.0
    %503 = vmatprep.subr.mxu0 0.0
    %504 = vmatpush1.xpose.msra.mxu0 0.0
    %505 = vmatprep.subr.mxu0 0.0
    %506 = vmatpush1.xpose.msra.mxu0 0.0
    %507 = vmatprep.subr.mxu0 0.0
    %508 = vmatpush1.xpose.msra.mxu0 0.0
    %509 = vmatprep.subr.mxu0 0.0
    %510 = vmatpush1.xpose.msra.mxu0 0.0
    %511 = vmatprep.subr.mxu0 0.0
    %512 = vmatpush1.xpose.msra.mxu0 0.0
    %513 = vmatprep.subr.mxu0 0.0
    %514 = vmatpush1.xpose.msra.mxu0 0.0
    %515 = vmatprep.subr.mxu0 0.0
    %516 = vmatpush1.xpose.msra.mxu0 0.0
    %517 = vmatprep.subr.mxu0 0.0
    %518 = vmatpush1.xpose.msra.mxu0 0.0
    %519 = vmatprep.subr.mxu0 0.0
    %520 = vmatpush1.xpose.msra.mxu0 0.0
    %521 = vmatprep.subr.mxu0 0.0
    %522 = vmatpush1.xpose.msra.mxu0 0.0
    %523 = vmatprep.subr.mxu0 0.0
    %524 = vmatpush1.xpose.msra.mxu0 0.0
    %525 = vmatprep.subr.mxu0 0.0
    %526 = vmatpush1.xpose.msra.mxu0 0.0
    %527 = vmatprep.subr.mxu0 0.0
    %528 = vmatpush1.xpose.msra.mxu0 0.0
    %529 = vmatprep.subr.mxu0 0.0
    %530 = vmatpush1.xpose.msra.mxu0 0.0
    %531 = vmatprep.subr.mxu0 0.0
    %532 = vmatpush1.xpose.msra.mxu0 0.0
    %533 = vmatprep.subr.mxu0 0.0
    %534 = vmatpush1.xpose.msra.mxu0 0.0
    %535 = vmatprep.subr.mxu0 0.0
    %536 = vmatpush1.xpose.msra.mxu0 0.0
    %537 = vmatprep.subr.mxu0 0.0
    %538 = vmatpush1.xpose.msra.mxu0 0.0
    %539 = vmatprep.subr.mxu0 0.0
    %540 = vmatpush1.xpose.msra.mxu0 0.0
    %541 = vmatprep.subr.mxu0 0.0
    %542 = vmatpush1.xpose.msra.mxu0 0.0
    %543 = vmatprep.subr.mxu0 0.0
    %544 = vmatpush1.xpose.msra.mxu0 0.0
    %545 = vmatprep.subr.mxu0 0.0
    %546 = vmatpush1.xpose.msra.mxu0 0.0
    %547 = vmatprep.subr.mxu0 0.0
    %548 = vmatpush1.xpose.msra.mxu0 0.0
    %549 = vmatprep.subr.mxu0 0.0
    %550 = vmatpush1.xpose.msra.mxu0 0.0
    %551 = vmatprep.subr.mxu0 0.0
    %552 = vmatpush1.xpose.msra.mxu0 0.0
    %553 = vmatprep.subr.mxu0 0.0
    %554 = vmatpush1.xpose.msra.mxu0 0.0
    %555 = vmatprep.mubr.f32.mxu0 0.0
    %556 = vmatmul.mubr.f32.gmra.mrb[0].mxu0 %v474
    %v557 = vpop.f32.mrb[0].mxu0
    %v558 = vadd.f32 %v470, %v557
    %v559 = vpop.f32.mrb[0].mxu0
    %560 = vmatprep.mubr.f32.mxu0 0.0
    %561 = vmatmul.mubr.f32.gmra.mrb[0].mxu0 %v477
    %v562 = vpop.f32.mrb[0].mxu0
    %v563 = vadd.f32 %v471, %v562
    %v564 = vpop.f32.mrb[0].mxu0
    %565 = vdwg.mxu0
    %v566 = vsel %vm209, %v558, -inf
    %567 = vmax.xlane.f32.xlu0 %v566
    %v568 = vpop.xlane.xlu0 %567
    %v569 = vsel %vm209, %v563, -inf
    %570 = vmax.xlane.f32.xlu0 %v569
    %v571 = vpop.xlane.xlu0 %570
    %v572 = vsub.f32 %v558, %v568
    %v573 = vsub.f32 %v563, %v571
    %v574 = vmul.f32 %v572, 1.442695
    %v575 = vpow.pop %v574
    %v576 = vmul.f32 %v573, 1.442695
    %v577 = vpow.pop %v576
    %v578 = vsel %vm209, %v575, 0.0
    %579 = vadd.xlane.f32.xlu0 %v578
    %v580 = vpop.xlane.xlu0 %579
    %v581 = vsel %vm209, %v577, 0.0
    %582 = vadd.xlane.f32.xlu0 %v581
    %v583 = vpop.xlane.xlu0 %582
    %v584 = vrcp.pop %v580
    %v585 = vmul.f32 %v575, %v584
    %v586 = vrcp.pop %v583
    %v587 = vmul.f32 %v577, %v586
    %588 = vrot.lane.b32.xlu0 %v425, 96
    %v589 = vpop.permute.xlu0 %588
    %590 = vrot.lane.b32.xlu0 %v430, 96
    %v591 = vpop.permute.xlu0 %590
    %592 = vrot.lane.b32.xlu0 %v435, 96
    %v593 = vpop.permute.xlu0 %592
    %594 = vrot.lane.b32.xlu0 %v440, 96
    %v595 = vpop.permute.xlu0 %594
    %v601 = vsel %vm209, %v585, 0
    %v604 = vsel %vm209, %v587, 0
    %606 = vmatprep.subr.mxu0 0.0
    %607 = vmatpush1.msra.mxu0 %v589
    %608 = vmatprep.subr.mxu0 0.0
    %609 = vmatpush1.msra.mxu0 %v591
    %610 = vmatprep.subr.mxu0 0.0
    %611 = vmatpush1.msra.mxu0 %v593
    %612 = vmatprep.subr.mxu0 0.0
    %613 = vmatpush1.msra.mxu0 %v595
    %614 = vmatprep.subr.mxu0 0.0
    %615 = vmatpush1.msra.mxu0 0.0
    %616 = vmatprep.subr.mxu0 0.0
    %617 = vmatpush1.msra.mxu0 0.0
    %618 = vmatprep.subr.mxu0 0.0
    %619 = vmatpush1.msra.mxu0 0.0
    %620 = vmatprep.subr.mxu0 0.0
    %621 = vmatpush1.msra.mxu0 0.0
    %622 = vmatprep.subr.mxu0 0.0
    %623 = vmatpush1.msra.mxu0 0.0
    %624 = vmatprep.subr.mxu0 0.0
    %625 = vmatpush1.msra.mxu0 0.0
    %626 = vmatprep.subr.mxu0 0.0
    %627 = vmatpush1.msra.mxu0 0.0
    %628 = vmatprep.subr.mxu0 0.0
    %629 = vmatpush1.msra.mxu0 0.0
    %630 = vmatprep.subr.mxu0 0.0
    %631 = vmatpush1.msra.mxu0 0.0
    %632 = vmatprep.subr.mxu0 0.0
    %633 = vmatpush1.msra.mxu0 0.0
    %634 = vmatprep.subr.mxu0 0.0
    %635 = vmatpush1.msra.mxu0 0.0
    %636 = vmatprep.subr.mxu0 0.0
    %637 = vmatpush1.msra.mxu0 0.0
    %638 = vmatprep.subr.mxu0 0.0
    %639 = vmatpush1.msra.mxu0 0.0
    %640 = vmatprep.subr.mxu0 0.0
    %641 = vmatpush1.msra.mxu0 0.0
    %642 = vmatprep.subr.mxu0 0.0
    %643 = vmatpush1.msra.mxu0 0.0
    %644 = vmatprep.subr.mxu0 0.0
    %645 = vmatpush1.msra.mxu0 0.0
    %646 = vmatprep.subr.mxu0 0.0
    %647 = vmatpush1.msra.mxu0 0.0
    %648 = vmatprep.subr.mxu0 0.0
    %649 = vmatpush1.msra.mxu0 0.0
    %650 = vmatprep.subr.mxu0 0.0
    %651 = vmatpush1.msra.mxu0 0.0
    %652 = vmatprep.subr.mxu0 0.0
    %653 = vmatpush1.msra.mxu0 0.0
    %654 = vmatprep.subr.mxu0 0.0
    %655 = vmatpush1.msra.mxu0 0.0
    %656 = vmatprep.subr.mxu0 0.0
    %657 = vmatpush1.msra.mxu0 0.0
    %658 = vmatprep.subr.mxu0 0.0
    %659 = vmatpush1.msra.mxu0 0.0
    %660 = vmatprep.subr.mxu0 0.0
    %661 = vmatpush1.msra.mxu0 0.0
    %662 = vmatprep.subr.mxu0 0.0
    %663 = vmatpush1.msra.mxu0 0.0
    %664 = vmatprep.subr.mxu0 0.0
    %665 = vmatpush1.msra.mxu0 0.0
    %666 = vmatprep.subr.mxu0 0.0
    %667 = vmatpush1.msra.mxu0 0.0
    %668 = vmatprep.subr.mxu0 0.0
    %669 = vmatpush1.msra.mxu0 0.0
    %670 = vmatprep.mubr.f32.mxu0 0.0
    %671 = vmatmul.mubr.f32.gmra.mrb[0].mxu0 %v601
    %v672 = vpop.f32.mrb[0].mxu0
    %v673 = vadd.f32 0.0, %v672
    %v674 = vpop.f32.mrb[0].mxu0
    %675 = vmatprep.mubr.f32.mxu0 0.0
    %676 = vmatmul.mubr.f32.gmra.mrb[0].mxu0 %v604
    %v677 = vpop.f32.mrb[0].mxu0
    %v678 = vadd.f32 0.0, %v677
    %v679 = vpop.f32.mrb[0].mxu0
    %680 = vdwg.mxu0
    %681 = vrot.lane.b32.xlu0 %v314, 112
    %v682 = vpop.permute.xlu0 %681
    %683 = vrot.lane.b32.xlu0 %v319, 112
    %v684 = vpop.permute.xlu0 %683
    %685 = vrot.lane.b32.xlu0 %v425, 112
    %v686 = vpop.permute.xlu0 %685
    %687 = vrot.lane.b32.xlu0 %v430, 112
    %v688 = vpop.permute.xlu0 %687
    %689 = vrot.lane.b32.xlu0 %v435, 112
    %v690 = vpop.permute.xlu0 %689
    %691 = vrot.lane.b32.xlu0 %v440, 112
    %v692 = vpop.permute.xlu0 %691
    %v693 = vsel %vm472, %v682, 0
    %v695 = vsel %vm472, %v684, 0
    %v697 = vsel %vm472, %v686, 0
    %v699 = vsel %vm472, %v688, 0
    %v701 = vsel %vm472, %v690, 0
    %v703 = vsel %vm472, %v692, 0
    %705 = vmatprep.subr.mxu0 0.0
    %706 = vmatpush1.xpose.msra.mxu0 %v697
    %707 = vmatprep.subr.mxu0 0.0
    %708 = vmatpush1.xpose.msra.mxu0 %v699
    %709 = vmatprep.subr.mxu0 0.0
    %710 = vmatpush1.xpose.msra.mxu0 %v701
    %711 = vmatprep.subr.mxu0 0.0
    %712 = vmatpush1.xpose.msra.mxu0 %v703
    %713 = vmatprep.subr.mxu0 0.0
    %714 = vmatpush1.xpose.msra.mxu0 0.0
    %715 = vmatprep.subr.mxu0 0.0
    %716 = vmatpush1.xpose.msra.mxu0 0.0
    %717 = vmatprep.subr.mxu0 0.0
    %718 = vmatpush1.xpose.msra.mxu0 0.0
    %719 = vmatprep.subr.mxu0 0.0
    %720 = vmatpush1.xpose.msra.mxu0 0.0
    %721 = vmatprep.subr.mxu0 0.0
    %722 = vmatpush1.xpose.msra.mxu0 0.0
    %723 = vmatprep.subr.mxu0 0.0
    %724 = vmatpush1.xpose.msra.mxu0 0.0
    %725 = vmatprep.subr.mxu0 0.0
    %726 = vmatpush1.xpose.msra.mxu0 0.0
    %727 = vmatprep.subr.mxu0 0.0
    %728 = vmatpush1.xpose.msra.mxu0 0.0
    %729 = vmatprep.subr.mxu0 0.0
    %730 = vmatpush1.xpose.msra.mxu0 0.0
    %731 = vmatprep.subr.mxu0 0.0
    %732 = vmatpush1.xpose.msra.mxu0 0.0
    %733 = vmatprep.subr.mxu0 0.0
    %734 = vmatpush1.xpose.msra.mxu0 0.0
    %735 = vmatprep.subr.mxu0 0.0
    %736 = vmatpush1.xpose.msra.mxu0 0.0
    %737 = vmatprep.subr.mxu0 0.0
    %738 = vmatpush1.xpose.msra.mxu0 0.0
    %739 = vmatprep.subr.mxu0 0.0
    %740 = vmatpush1.xpose.msra.mxu0 0.0
    %741 = vmatprep.subr.mxu0 0.0
    %742 = vmatpush1.xpose.msra.mxu0 0.0
    %743 = vmatprep.subr.mxu0 0.0
    %744 = vmatpush1.xpose.msra.mxu0 0.0
    %745 = vmatprep.subr.mxu0 0.0
    %746 = vmatpush1.xpose.msra.mxu0 0.0
    %747 = vmatprep.subr.mxu0 0.0
    %748 = vmatpush1.xpose.msra.mxu0 0.0
    %749 = vmatprep.subr.mxu0 0.0
    %750 = vmatpush1.xpose.msra.mxu0 0.0
    %751 = vmatprep.subr.mxu0 0.0
    %752 = vmatpush1.xpose.msra.mxu0 0.0
    %753 = vmatprep.subr.mxu0 0.0
    %754 = vmatpush1.xpose.msra.mxu0 0.0
    %755 = vmatprep.subr.mxu0 0.0
    %756 = vmatpush1.xpose.msra.mxu0 0.0
    %757 = vmatprep.subr.mxu0 0.0
    %758 = vmatpush1.xpose.msra.mxu0 0.0
    %759 = vmatprep.subr.mxu0 0.0
    %760 = vmatpush1.xpose.msra.mxu0 0.0
    %761 = vmatprep.subr.mxu0 0.0
    %762 = vmatpush1.xpose.msra.mxu0 0.0
    %763 = vmatprep.subr.mxu0 0.0
    %764 = vmatpush1.xpose.msra.mxu0 0.0
    %765 = vmatprep.subr.mxu0 0.0
    %766 = vmatpush1.xpose.msra.mxu0 0.0
    %767 = vmatprep.subr.mxu0 0.0
    %768 = vmatpush1.xpose.msra.mxu0 0.0
    %769 = vmatprep.mubr.f32.mxu0 0.0
    %770 = vmatmul.mubr.f32.gmra.mrb[0].mxu0 %v693
    %v771 = vpop.f32.mrb[0].mxu0
    %v772 = vadd.f32 %v470, %v771
    %v773 = vpop.f32.mrb[0].mxu0
    %774 = vmatprep.mubr.f32.mxu0 0.0
    %775 = vmatmul.mubr.f32.gmra.mrb[0].mxu0 %v695
    %v776 = vpop.f32.mrb[0].mxu0
    %v777 = vadd.f32 %v471, %v776
    %v778 = vpop.f32.mrb[0].mxu0
    %779 = vdwg.mxu0
    %v780 = vsel %vm209, %v772, -inf
    %781 = vmax.xlane.f32.xlu0 %v780
    %v782 = vpop.xlane.xlu0 %781
    %v783 = vsel %vm209, %v777, -inf
    %784 = vmax.xlane.f32.xlu0 %v783
    %v785 = vpop.xlane.xlu0 %784
    %v786 = vsub.f32 %v772, %v782
    %v787 = vsub.f32 %v777, %v785
    %v788 = vmul.f32 %v786, 1.442695
    %v789 = vpow.pop %v788
    %v790 = vmul.f32 %v787, 1.442695
    %v791 = vpow.pop %v790
    %v792 = vsel %vm209, %v789, 0.0
    %793 = vadd.xlane.f32.xlu0 %v792
    %v794 = vpop.xlane.xlu0 %793
    %v795 = vsel %vm209, %v791, 0.0
    %796 = vadd.xlane.f32.xlu0 %v795
    %v797 = vpop.xlane.xlu0 %796
    %v798 = vrcp.pop %v794
    %v799 = vmul.f32 %v789, %v798
    %v800 = vrcp.pop %v797
    %v801 = vmul.f32 %v791, %v800
    %802 = vrot.lane.b32.xlu0 %v425, 80
    %v803 = vpop.permute.xlu0 %802
    %804 = vrot.lane.b32.xlu0 %v430, 80
    %v805 = vpop.permute.xlu0 %804
    %806 = vrot.lane.b32.xlu0 %v435, 80
    %v807 = vpop.permute.xlu0 %806
    %808 = vrot.lane.b32.xlu0 %v440, 80
    %v809 = vpop.permute.xlu0 %808
    %v815 = vsel %vm209, %v799, 0
    %v818 = vsel %vm209, %v801, 0
    %820 = vmatprep.subr.mxu0 0.0
    %821 = vmatpush1.msra.mxu0 %v803
    %822 = vmatprep.subr.mxu0 0.0
    %823 = vmatpush1.msra.mxu0 %v805
    %824 = vmatprep.subr.mxu0 0.0
    %825 = vmatpush1.msra.mxu0 %v807
    %826 = vmatprep.subr.mxu0 0.0
    %827 = vmatpush1.msra.mxu0 %v809
    %828 = vmatprep.subr.mxu0 0.0
    %829 = vmatpush1.msra.mxu0 0.0
    %830 = vmatprep.subr.mxu0 0.0
    %831 = vmatpush1.msra.mxu0 0.0
    %832 = vmatprep.subr.mxu0 0.0
    %833 = vmatpush1.msra.mxu0 0.0
    %834 = vmatprep.subr.mxu0 0.0
    %835 = vmatpush1.msra.mxu0 0.0
    %836 = vmatprep.subr.mxu0 0.0
    %837 = vmatpush1.msra.mxu0 0.0
    %838 = vmatprep.subr.mxu0 0.0
    %839 = vmatpush1.msra.mxu0 0.0
    %840 = vmatprep.subr.mxu0 0.0
    %841 = vmatpush1.msra.mxu0 0.0
    %842 = vmatprep.subr.mxu0 0.0
    %843 = vmatpush1.msra.mxu0 0.0
    %844 = vmatprep.subr.mxu0 0.0
    %845 = vmatpush1.msra.mxu0 0.0
    %846 = vmatprep.subr.mxu0 0.0
    %847 = vmatpush1.msra.mxu0 0.0
    %848 = vmatprep.subr.mxu0 0.0
    %849 = vmatpush1.msra.mxu0 0.0
    %850 = vmatprep.subr.mxu0 0.0
    %851 = vmatpush1.msra.mxu0 0.0
    %852 = vmatprep.subr.mxu0 0.0
    %853 = vmatpush1.msra.mxu0 0.0
    %854 = vmatprep.subr.mxu0 0.0
    %855 = vmatpush1.msra.mxu0 0.0
    %856 = vmatprep.subr.mxu0 0.0
    %857 = vmatpush1.msra.mxu0 0.0
    %858 = vmatprep.subr.mxu0 0.0
    %859 = vmatpush1.msra.mxu0 0.0
    %860 = vmatprep.subr.mxu0 0.0
    %861 = vmatpush1.msra.mxu0 0.0
    %862 = vmatprep.subr.mxu0 0.0
    %863 = vmatpush1.msra.mxu0 0.0
    %864 = vmatprep.subr.mxu0 0.0
    %865 = vmatpush1.msra.mxu0 0.0
    %866 = vmatprep.subr.mxu0 0.0
    %867 = vmatpush1.msra.mxu0 0.0
    %868 = vmatprep.subr.mxu0 0.0
    %869 = vmatpush1.msra.mxu0 0.0
    %870 = vmatprep.subr.mxu0 0.0
    %871 = vmatpush1.msra.mxu0 0.0
    %872 = vmatprep.subr.mxu0 0.0
    %873 = vmatpush1.msra.mxu0 0.0
    %874 = vmatprep.subr.mxu0 0.0
    %875 = vmatpush1.msra.mxu0 0.0
    %876 = vmatprep.subr.mxu0 0.0
    %877 = vmatpush1.msra.mxu0 0.0
    %878 = vmatprep.subr.mxu0 0.0
    %879 = vmatpush1.msra.mxu0 0.0
    %880 = vmatprep.subr.mxu0 0.0
    %881 = vmatpush1.msra.mxu0 0.0
    %882 = vmatprep.subr.mxu0 0.0
    %883 = vmatpush1.msra.mxu0 0.0
    %884 = vmatprep.mubr.f32.mxu0 0.0
    %885 = vmatmul.mubr.f32.gmra.mrb[0].mxu0 %v815
    %v886 = vpop.f32.mrb[0].mxu0
    %v887 = vadd.f32 0.0, %v886
    %v888 = vpop.f32.mrb[0].mxu0
    %889 = vmatprep.mubr.f32.mxu0 0.0
    %890 = vmatmul.mubr.f32.gmra.mrb[0].mxu0 %v818
    %v891 = vpop.f32.mrb[0].mxu0
    %v892 = vadd.f32 0.0, %v891
    %v893 = vpop.f32.mrb[0].mxu0
    %894 = vdwg.mxu0
    %897 = vrot.lane.b32.xlu0 %v887, 16
    %v898 = vpop.permute.xlu0 %897
    %899 = vrot.lane.b32.xlu0 %v892, 16
    %v900 = vpop.permute.xlu0 %899
    %v903 = vsel %vm472, %v673, %v898
    %v904 = vsel %vm472, %v678, %v900
    %v906 = vsel %vm209, %v903, 0
    %v909 = vsel %vm209, %v904, 0
    %911 = vmatprep.subr.mxu0 0.0
    %912 = vmatpush1.msra.mxu0 %v48
    %913 = vmatprep.subr.mxu0 0.0
    %914 = vmatpush1.msra.mxu0 %v49
    %915 = vmatprep.subr.mxu0 0.0
    %916 = vmatpush1.msra.mxu0 %v50
    %917 = vmatprep.subr.mxu0 0.0
    %918 = vmatpush1.msra.mxu0 %v51
    %919 = vmatprep.subr.mxu0 0.0
    %920 = vmatpush1.msra.mxu0 0.0
    %921 = vmatprep.subr.mxu0 0.0
    %922 = vmatpush1.msra.mxu0 0.0
    %923 = vmatprep.subr.mxu0 0.0
    %924 = vmatpush1.msra.mxu0 0.0
    %925 = vmatprep.subr.mxu0 0.0
    %926 = vmatpush1.msra.mxu0 0.0
    %927 = vmatprep.subr.mxu0 0.0
    %928 = vmatpush1.msra.mxu0 0.0
    %929 = vmatprep.subr.mxu0 0.0
    %930 = vmatpush1.msra.mxu0 0.0
    %931 = vmatprep.subr.mxu0 0.0
    %932 = vmatpush1.msra.mxu0 0.0
    %933 = vmatprep.subr.mxu0 0.0
    %934 = vmatpush1.msra.mxu0 0.0
    %935 = vmatprep.subr.mxu0 0.0
    %936 = vmatpush1.msra.mxu0 0.0
    %937 = vmatprep.subr.mxu0 0.0
    %938 = vmatpush1.msra.mxu0 0.0
    %939 = vmatprep.subr.mxu0 0.0
    %940 = vmatpush1.msra.mxu0 0.0
    %941 = vmatprep.subr.mxu0 0.0
    %942 = vmatpush1.msra.mxu0 0.0
    %943 = vmatprep.subr.mxu0 0.0
    %944 = vmatpush1.msra.mxu0 0.0
    %945 = vmatprep.subr.mxu0 0.0
    %946 = vmatpush1.msra.mxu0 0.0
    %947 = vmatprep.subr.mxu0 0.0
    %948 = vmatpush1.msra.mxu0 0.0
    %949 = vmatprep.subr.mxu0 0.0
    %950 = vmatpush1.msra.mxu0 0.0
    %951 = vmatprep.subr.mxu0 0.0
    %952 = vmatpush1.msra.mxu0 0.0
    %953 = vmatprep.subr.mxu0 0.0
    %954 = vmatpush1.msra.mxu0 0.0
    %955 = vmatprep.subr.mxu0 0.0
    %956 = vmatpush1.msra.mxu0 0.0
    %957 = vmatprep.subr.mxu0 0.0
    %958 = vmatpush1.msra.mxu0 0.0
    %959 = vmatprep.subr.mxu0 0.0
    %960 = vmatpush1.msra.mxu0 0.0
    %961 = vmatprep.subr.mxu0 0.0
    %962 = vmatpush1.msra.mxu0 0.0
    %963 = vmatprep.subr.mxu0 0.0
    %964 = vmatpush1.msra.mxu0 0.0
    %965 = vmatprep.subr.mxu0 0.0
    %966 = vmatpush1.msra.mxu0 0.0
    %967 = vmatprep.subr.mxu0 0.0
    %968 = vmatpush1.msra.mxu0 0.0
    %969 = vmatprep.subr.mxu0 0.0
    %970 = vmatpush1.msra.mxu0 0.0
    %971 = vmatprep.subr.mxu0 0.0
    %972 = vmatpush1.msra.mxu0 0.0
    %973 = vmatprep.subr.mxu0 0.0
    %974 = vmatpush1.msra.mxu0 0.0
    %975 = vmatprep.mubr.f32.mxu0 0.0
    %976 = vmatmul.mubr.f32.gmra.mrb[0].mxu0 %v906
    %v977 = vpop.f32.mrb[0].mxu0
    %v978 = vadd.f32 0.0, %v977
    %v979 = vpop.f32.mrb[0].mxu0
    %980 = vmatprep.mubr.f32.mxu0 0.0
    %981 = vmatmul.mubr.f32.gmra.mrb[0].mxu0 %v909
    %v982 = vpop.f32.mrb[0].mxu0
    %v983 = vadd.f32 0.0, %v982
    %v984 = vpop.f32.mrb[0].mxu0
    %985 = vdwg.mxu0
    %v986 = vadd.f32 %v196, %v978
    %v987 = vadd.f32 %v206, %v983
    %v988 = vsel %vm209, %v986, 0.0
    %989 = vadd.xlane.f32.xlu0 %v988
    %v990 = vpop.xlane.xlu0 %989
    %v991 = vsel %vm209, %v987, 0.0
    %992 = vadd.xlane.f32.xlu0 %v991
    %v993 = vpop.xlane.xlu0 %992
    %v994 = vmul.f32 %v990, %v216
    %v995 = vmul.f32 %v993, %v216
    %v996 = vsub.f32 %v986, %v994
    %v997 = vsub.f32 %v987, %v995
    %v998 = vmul.f32 %v996, %v996
    %v999 = vmul.f32 %v997, %v997
    %v1000 = vsel %vm209, %v998, 0.0
    %1001 = vadd.xlane.f32.xlu0 %v1000
    %v1002 = vpop.xlane.xlu0 %1001
    %v1003 = vsel %vm209, %v999, 0.0
    %1004 = vadd.xlane.f32.xlu0 %v1003
    %v1005 = vpop.xlane.xlu0 %1004
    %v1006 = vmul.f32 %v1002, %v216
    %v1007 = vmul.f32 %v1005, %v216
    %v1008 = vadd.f32 %v1006, 1e-05
    %v1009 = vadd.f32 %v1007, 1e-05
    %v1010 = vrsqrt.pop %v1008
    %v1011 = vrsqrt.pop %v1009
    %v1012 = vmul.f32 %v996, %v1010
    %v1013 = vmul.f32 %v997, %v1011
    %v1014 = vlaneseq
    %v1015 = vshrl.u32 %v1014, 7
    %v1016 = vsub.s32 0, %v1015
    %v1017 = vrot.slane %v78, %v1016
    %v1019 = vsel %vm209, %v1012, 0
    %v1022 = vsel %vm209, %v1013, 0
    %1024 = vmatprep.subr.mxu0 0.0
    %1025 = vmatpush1.msra.mxu0 %v52
    %1026 = vmatprep.subr.mxu0 0.0
    %1027 = vmatpush1.msra.mxu0 %v53
    %1028 = vmatprep.subr.mxu0 0.0
    %1029 = vmatpush1.msra.mxu0 %v54
    %1030 = vmatprep.subr.mxu0 0.0
    %1031 = vmatpush1.msra.mxu0 %v55
    %1032 = vmatprep.subr.mxu0 0.0
    %1033 = vmatpush1.msra.mxu0 0.0
    %1034 = vmatprep.subr.mxu0 0.0
    %1035 = vmatpush1.msra.mxu0 0.0
    %1036 = vmatprep.subr.mxu0 0.0
    %1037 = vmatpush1.msra.mxu0 0.0
    %1038 = vmatprep.subr.mxu0 0.0
    %1039 = vmatpush1.msra.mxu0 0.0
    %1040 = vmatprep.subr.mxu0 0.0
    %1041 = vmatpush1.msra.mxu0 0.0
    %1042 = vmatprep.subr.mxu0 0.0
    %1043 = vmatpush1.msra.mxu0 0.0
    %1044 = vmatprep.subr.mxu0 0.0
    %1045 = vmatpush1.msra.mxu0 0.0
    %1046 = vmatprep.subr.mxu0 0.0
    %1047 = vmatpush1.msra.mxu0 0.0
    %1048 = vmatprep.subr.mxu0 0.0
    %1049 = vmatpush1.msra.mxu0 0.0
    %1050 = vmatprep.subr.mxu0 0.0
    %1051 = vmatpush1.msra.mxu0 0.0
    %1052 = vmatprep.subr.mxu0 0.0
    %1053 = vmatpush1.msra.mxu0 0.0
    %1054 = vmatprep.subr.mxu0 0.0
    %1055 = vmatpush1.msra.mxu0 0.0
    %1056 = vmatprep.subr.mxu0 0.0
    %1057 = vmatpush1.msra.mxu0 0.0
    %1058 = vmatprep.subr.mxu0 0.0
    %1059 = vmatpush1.msra.mxu0 0.0
    %1060 = vmatprep.subr.mxu0 0.0
    %1061 = vmatpush1.msra.mxu0 0.0
    %1062 = vmatprep.subr.mxu0 0.0
    %1063 = vmatpush1.msra.mxu0 0.0
    %1064 = vmatprep.subr.mxu0 0.0
    %1065 = vmatpush1.msra.mxu0 0.0
    %1066 = vmatprep.subr.mxu0 0.0
    %1067 = vmatpush1.msra.mxu0 0.0
    %1068 = vmatprep.subr.mxu0 0.0
    %1069 = vmatpush1.msra.mxu0 0.0
    %1070 = vmatprep.subr.mxu0 0.0
    %1071 = vmatpush1.msra.mxu0 0.0
    %1072 = vmatprep.subr.mxu0 0.0
    %1073 = vmatpush1.msra.mxu0 0.0
    %1074 = vmatprep.subr.mxu0 0.0
    %1075 = vmatpush1.msra.mxu0 0.0
    %1076 = vmatprep.subr.mxu0 0.0
    %1077 = vmatpush1.msra.mxu0 0.0
    %1078 = vmatprep.subr.mxu0 0.0
    %1079 = vmatpush1.msra.mxu0 0.0
    %1080 = vmatprep.subr.mxu0 0.0
    %1081 = vmatpush1.msra.mxu0 0.0
    %1082 = vmatprep.subr.mxu0 0.0
    %1083 = vmatpush1.msra.mxu0 0.0
    %1084 = vmatprep.subr.mxu0 0.0
    %1085 = vmatpush1.msra.mxu0 0.0
    %1086 = vmatprep.subr.mxu0 0.0
    %1087 = vmatpush1.msra.mxu0 0.0
    %1088 = vmatprep.mubr.f32.mxu0 0.0
    %1089 = vmatmul.mubr.f32.gmra.mrb[0].mxu0 %v1019
    %v1090 = vpop.f32.mrb[0].mxu0
    %v1091 = vadd.f32 %v1017, %v1090
    %v1092 = vpop.f32.mrb[0].mxu0
    %1093 = vmatprep.mubr.f32.mxu0 0.0
    %1094 = vmatmul.mubr.f32.gmra.mrb[0].mxu0 %v1022
    %v1095 = vpop.f32.mrb[0].mxu0
    %v1096 = vadd.f32 %v1017, %v1095
    %v1097 = vpop.f32.mrb[0].mxu0
    %1098 = vdwg.mxu0
    %v1099 = vmul.f32 %v1091, 0.5
    %v1100 = vmul.f32 %v1096, 0.5
    %v1101 = vmul.f32 %v1091, 0.70710677
    %v1102 = vmul.f32 %v1096, 0.70710677
    %v1103 = verf.f32.pop %v1101
    %v1104 = verf.f32.pop %v1102
    %v1105 = vadd.f32 %v1103, 1.0
    %v1106 = vadd.f32 %v1104, 1.0
    %v1107 = vmul.f32 %v1099, %v1105
    %v1108 = vmul.f32 %v1100, %v1106
    %1109 = vmatprep.subr.mxu0 0.0
    %1110 = vmatpush1.msra.mxu0 %v56
    %1111 = vmatprep.subr.mxu0 0.0
    %1112 = vmatpush1.msra.mxu0 %v57
    %1113 = vmatprep.subr.mxu0 0.0
    %1114 = vmatpush1.msra.mxu0 %v58
    %1115 = vmatprep.subr.mxu0 0.0
    %1116 = vmatpush1.msra.mxu0 %v59
    %1117 = vmatprep.subr.mxu0 0.0
    %1118 = vmatpush1.msra.mxu0 %v60
    %1119 = vmatprep.subr.mxu0 0.0
    %1120 = vmatpush1.msra.mxu0 %v61
    %1121 = vmatprep.subr.mxu0 0.0
    %1122 = vmatpush1.msra.mxu0 %v62
    %1123 = vmatprep.subr.mxu0 0.0
    %1124 = vmatpush1.msra.mxu0 %v63
    %1125 = vmatprep.subr.mxu0 0.0
    %1126 = vmatpush1.msra.mxu0 %v64
    %1127 = vmatprep.subr.mxu0 0.0
    %1128 = vmatpush1.msra.mxu0 %v65
    %1129 = vmatprep.subr.mxu0 0.0
    %1130 = vmatpush1.msra.mxu0 %v66
    %1131 = vmatprep.subr.mxu0 0.0
    %1132 = vmatpush1.msra.mxu0 %v67
    %1133 = vmatprep.subr.mxu0 0.0
    %1134 = vmatpush1.msra.mxu0 %v68
    %1135 = vmatprep.subr.mxu0 0.0
    %1136 = vmatpush1.msra.mxu0 %v69
    %1137 = vmatprep.subr.mxu0 0.0
    %1138 = vmatpush1.msra.mxu0 %v70
    %1139 = vmatprep.subr.mxu0 0.0
    %1140 = vmatpush1.msra.mxu0 %v71
    %1141 = vmatprep.subr.mxu0 0.0
    %1142 = vmatpush1.msra.mxu0 0.0
    %1143 = vmatprep.subr.mxu0 0.0
    %1144 = vmatpush1.msra.mxu0 0.0
    %1145 = vmatprep.subr.mxu0 0.0
    %1146 = vmatpush1.msra.mxu0 0.0
    %1147 = vmatprep.subr.mxu0 0.0
    %1148 = vmatpush1.msra.mxu0 0.0
    %1149 = vmatprep.subr.mxu0 0.0
    %1150 = vmatpush1.msra.mxu0 0.0
    %1151 = vmatprep.subr.mxu0 0.0
    %1152 = vmatpush1.msra.mxu0 0.0
    %1153 = vmatprep.subr.mxu0 0.0
    %1154 = vmatpush1.msra.mxu0 0.0
    %1155 = vmatprep.subr.mxu0 0.0
    %1156 = vmatpush1.msra.mxu0 0.0
    %1157 = vmatprep.subr.mxu0 0.0
    %1158 = vmatpush1.msra.mxu0 0.0
    %1159 = vmatprep.subr.mxu0 0.0
    %1160 = vmatpush1.msra.mxu0 0.0
    %1161 = vmatprep.subr.mxu0 0.0
    %1162 = vmatpush1.msra.mxu0 0.0
    %1163 = vmatprep.subr.mxu0 0.0
    %1164 = vmatpush1.msra.mxu0 0.0
    %1165 = vmatprep.subr.mxu0 0.0
    %1166 = vmatpush1.msra.mxu0 0.0
    %1167 = vmatprep.subr.mxu0 0.0
    %1168 = vmatpush1.msra.mxu0 0.0
    %1169 = vmatprep.subr.mxu0 0.0
    %1170 = vmatpush1.msra.mxu0 0.0
    %1171 = vmatprep.subr.mxu0 0.0
    %1172 = vmatpush1.msra.mxu0 0.0
    %1173 = vmatprep.mubr.f32.mxu0 0.0
    %1174 = vmatmul.mubr.f32.gmra.mrb[0].mxu0 %v1107
    %v1175 = vpop.f32.mrb[0].mxu0
    %v1176 = vadd.f32 0.0, %v1175
    %v1177 = vpop.f32.mrb[0].mxu0
    %1178 = vmatprep.mubr.f32.mxu0 0.0
    %1179 = vmatmul.mubr.f32.gmra.mrb[0].mxu0 %v1108
    %v1180 = vpop.f32.mrb[0].mxu0
    %v1181 = vadd.f32 0.0, %v1180
    %v1182 = vpop.f32.mrb[0].mxu0
    %1183 = vdwg.mxu0
    %v1184 = vadd.f32 %v986, %v1176
    %v1185 = vadd.f32 %v987, %v1181
    %v1186 = vlaneseq
    %v1187 = vshrl.u32 %v1186, 7
    %v1188 = vsub.s32 0, %v1187
    %v1189 = vrot.slane %v79, %v1188
    %v1190 = vadd.f32 %v1184, %v1189
    %v1191 = vadd.f32 %v1185, %v1189
    %v1192 = vsel %vm209, %v1190, 0.0
    %1193 = vadd.xlane.f32.xlu0 %v1192
    %v1194 = vpop.xlane.xlu0 %1193
    %v1195 = vsel %vm209, %v1191, 0.0
    %1196 = vadd.xlane.f32.xlu0 %v1195
    %v1197 = vpop.xlane.xlu0 %1196
    %v1198 = vmul.f32 %v1194, %v216
    %v1199 = vmul.f32 %v1197, %v216
    %v1200 = vsub.f32 %v1190, %v1198
    %v1201 = vsub.f32 %v1191, %v1199
    %v1202 = vmul.f32 %v1200, %v1200
    %v1203 = vmul.f32 %v1201, %v1201
    %v1204 = vsel %vm209, %v1202, 0.0
    %1205 = vadd.xlane.f32.xlu0 %v1204
    %v1206 = vpop.xlane.xlu0 %1205
    %v1207 = vsel %vm209, %v1203, 0.0
    %1208 = vadd.xlane.f32.xlu0 %v1207
    %v1209 = vpop.xlane.xlu0 %1208
    %v1210 = vmul.f32 %v1206, %v216
    %v1211 = vmul.f32 %v1209, %v216
    %v1212 = vadd.f32 %v1210, 1e-05
    %v1213 = vadd.f32 %v1211, 1e-05
    %v1214 = vrsqrt.pop %v1212
    %v1215 = vrsqrt.pop %v1213
    %v1216 = vmul.f32 %v1200, %v1214
    %v1217 = vmul.f32 %v1201, %v1215
    %v1218 = vlaneseq
    %v1219 = vshrl.u32 %v1218, 7
    %v1220 = vsub.s32 0, %v1219
    %v1221 = vrot.slane %v80, %v1220
    %v1223 = vsel %vm209, %v1216, 0
    %v1226 = vsel %vm209, %v1217, 0
    %1228 = vmatprep.subr.mxu0 0.0
    %1229 = vmatpush1.msra.mxu0 %v72
    %1230 = vmatprep.subr.mxu0 0.0
    %1231 = vmatpush1.msra.mxu0 %v73
    %1232 = vmatprep.subr.mxu0 0.0
    %1233 = vmatpush1.msra.mxu0 %v74
    %1234 = vmatprep.subr.mxu0 0.0
    %1235 = vmatpush1.msra.mxu0 %v75
    %1236 = vmatprep.subr.mxu0 0.0
    %1237 = vmatpush1.msra.mxu0 0.0
    %1238 = vmatprep.subr.mxu0 0.0
    %1239 = vmatpush1.msra.mxu0 0.0
    %1240 = vmatprep.subr.mxu0 0.0
    %1241 = vmatpush1.msra.mxu0 0.0
    %1242 = vmatprep.subr.mxu0 0.0
    %1243 = vmatpush1.msra.mxu0 0.0
    %1244 = vmatprep.subr.mxu0 0.0
    %1245 = vmatpush1.msra.mxu0 0.0
    %1246 = vmatprep.subr.mxu0 0.0
    %1247 = vmatpush1.msra.mxu0 0.0
    %1248 = vmatprep.subr.mxu0 0.0
    %1249 = vmatpush1.msra.mxu0 0.0
    %1250 = vmatprep.subr.mxu0 0.0
    %1251 = vmatpush1.msra.mxu0 0.0
    %1252 = vmatprep.subr.mxu0 0.0
    %1253 = vmatpush1.msra.mxu0 0.0
    %1254 = vmatprep.subr.mxu0 0.0
    %1255 = vmatpush1.msra.mxu0 0.0
    %1256 = vmatprep.subr.mxu0 0.0
    %1257 = vmatpush1.msra.mxu0 0.0
    %1258 = vmatprep.subr.mxu0 0.0
    %1259 = vmatpush1.msra.mxu0 0.0
    %1260 = vmatprep.subr.mxu0 0.0
    %1261 = vmatpush1.msra.mxu0 0.0
    %1262 = vmatprep.subr.mxu0 0.0
    %1263 = vmatpush1.msra.mxu0 0.0
    %1264 = vmatprep.subr.mxu0 0.0
    %1265 = vmatpush1.msra.mxu0 0.0
    %1266 = vmatprep.subr.mxu0 0.0
    %1267 = vmatpush1.msra.mxu0 0.0
    %1268 = vmatprep.subr.mxu0 0.0
    %1269 = vmatpush1.msra.mxu0 0.0
    %1270 = vmatprep.subr.mxu0 0.0
    %1271 = vmatpush1.msra.mxu0 0.0
    %1272 = vmatprep.subr.mxu0 0.0
    %1273 = vmatpush1.msra.mxu0 0.0
    %1274 = vmatprep.subr.mxu0 0.0
    %1275 = vmatpush1.msra.mxu0 0.0
    %1276 = vmatprep.subr.mxu0 0.0
    %1277 = vmatpush1.msra.mxu0 0.0
    %1278 = vmatprep.subr.mxu0 0.0
    %1279 = vmatpush1.msra.mxu0 0.0
    %1280 = vmatprep.subr.mxu0 0.0
    %1281 = vmatpush1.msra.mxu0 0.0
    %1282 = vmatprep.subr.mxu0 0.0
    %1283 = vmatpush1.msra.mxu0 0.0
    %1284 = vmatprep.subr.mxu0 0.0
    %1285 = vmatpush1.msra.mxu0 0.0
    %1286 = vmatprep.subr.mxu0 0.0
    %1287 = vmatpush1.msra.mxu0 0.0
    %1288 = vmatprep.subr.mxu0 0.0
    %1289 = vmatpush1.msra.mxu0 0.0
    %1290 = vmatprep.subr.mxu0 0.0
    %1291 = vmatpush1.msra.mxu0 0.0
    %1292 = vmatprep.mubr.f32.mxu0 0.0
    %1293 = vmatmul.mubr.f32.gmra.mrb[0].mxu0 %v1223
    %v1294 = vpop.f32.mrb[0].mxu0
    %v1295 = vadd.f32 %v1221, %v1294
    %v1296 = vpop.f32.mrb[0].mxu0
    %1297 = vmatprep.mubr.f32.mxu0 0.0
    %1298 = vmatmul.mubr.f32.gmra.mrb[0].mxu0 %v1226
    %v1299 = vpop.f32.mrb[0].mxu0
    %v1300 = vadd.f32 %v1221, %v1299
    %v1301 = vpop.f32.mrb[0].mxu0
    %1302 = vdwg.mxu0
    %1303 = vst [vmem:[%s3] sm:$0xff] %v1295
    %1304 = vst [vmem:[%s3 + $0x8] sm:$0xff] %v1300
    // Predicated region
    $region18: #{_perceiver_ar_forward.1} parent=1 // pred_check
      _
    $region19: #{_perceiver_ar_forward.1} parent=1 // pred_check_branch
      %1306 = sbr.rel (0) target = $region21
    $region20: #{_perceiver_ar_forward.1} parent=1 // pred_region
      _
    $region21: #{_perceiver_ar_forward.1} parent=1 // pred_fallthru
      _
    // Predicated region
    $region22: #{_perceiver_ar_forward.1} parent=1 // pred_check
      _
    $region23: #{_perceiver_ar_forward.1} parent=1 // pred_check_branch
      %1308 = sbr.rel (0) target = $region25
    $region24: #{_perceiver_ar_forward.1} parent=1 // pred_region
      _
    $region25: #{_perceiver_ar_forward.1} parent=1 // pred_fallthru
      _
    %1309 = vsyncpa [#allocation3], 1

</llo_original>
